<compile_context>
chip_gen: v5e
topology: v5e:2x2
jax: 0.10.0
libtpu: 0.0.40
codegen_flags: <defaults>
</compile_context>

<pallas_src>
import numpy as np
import jax
import jax.numpy as jnp
from jax.experimental import pallas as pl
from jax.experimental.pallas import tpu as pltpu


# ----------------------------------------------------------------------------
# Host-side constant: bilinear x2 (align_corners=True) upsample + center pad,
# expressed as one pixel-gather matrix U[h*Wout + w, p*Win + q].
# ----------------------------------------------------------------------------
def _interp_matrix_align_corners(n_out, n_in):
    m = np.zeros((n_out, n_in), dtype=np.float32)
    if n_in == 1 or n_out == 1:
        m[:, 0] = 1.0
        return m
    scale = (n_in - 1) / (n_out - 1)
    for i in range(n_out):
        src = i * scale
        i0 = min(int(np.floor(src)), n_in - 1)
        i1 = min(i0 + 1, n_in - 1)
        f = src - i0
        m[i, i0] += 1.0 - f
        m[i, i1] += f
    return m


def _upsample_pad_matrix(h_out, w_out, h_in, w_in):
    """[h_out*w_out, h_in*w_in]: bilinear x2 upsample then F.pad-style center pad/crop."""
    hu, wu = 2 * h_in, 2 * w_in
    rh_core = _interp_matrix_align_corners(hu, h_in)
    rw_core = _interp_matrix_align_corners(wu, w_in)
    rh = np.zeros((h_out, h_in), dtype=np.float32)
    rw = np.zeros((w_out, w_in), dtype=np.float32)
    pt = (h_out - hu) // 2
    pw = (w_out - wu) // 2
    for i in range(h_out):
        j = i - pt
        if 0 <= j < hu:
            rh[i] = rh_core[j]
    for i in range(w_out):
        j = i - pw
        if 0 <= j < wu:
            rw[i] = rw_core[j]
    return jnp.asarray(np.kron(rh, rw))


# ----------------------------------------------------------------------------
# Kernel 1: upsample + pad + AttentionGate + channel concat (one sample / step)
# ----------------------------------------------------------------------------
def upgate_kernel(x1_ref, x2_ref, u_ref, wg_ref, bg_ref, wx_ref, bx_ref,
                  wp_ref, bp_ref, xc_ref):
    _, H2, W2, c_tot = xc_ref.shape
    x1p = x1_ref[0]                                     # [H1*W1, C]  pixel-major
    x2p = x2_ref[0]                                     # [H2*W2, C]

    # bilinear x2 upsample + center pad: single MXU contraction (K = H1*W1).
    x1u = jnp.dot(u_ref[...], x1p, preferred_element_type=jnp.float32)   # [H2*W2, C]

    # AttentionGate: 1x1 convs as matmuls (BatchNorm folded, inference mode).
    g1 = jnp.dot(x1u, wg_ref[...], preferred_element_type=jnp.float32) + bg_ref[...]
    xl = jnp.dot(x2p, wx_ref[...], preferred_element_type=jnp.float32) + bx_ref[...]
    p = jnp.maximum(g1 + xl, 0.0)                                         # ReLU
    s = jnp.sum(p * wp_ref[...], axis=-1, keepdims=True) + bp_ref[...]    # psi 1x1 conv
    att = x2p * jax.nn.sigmoid(s)                                         # gated skip

    # torch.cat([x2_att, x1_up], dim=channel), stored as one [H2, W2, 2C] block.
    xc = jnp.concatenate([att, x1u], axis=-1)                             # [H2*W2, 2C]
    xc_ref[0] = xc.reshape(H2, W2, c_tot)


def upsample_attention_concat(x1p, x2p, u, params, h2, w2):
    B, n1, c_in = x1p.shape
    _, n2, c_sk = x2p.shape
    c_tot = c_in + c_sk
    return pl.pallas_call(
        upgate_kernel,
        out_shape=jax.ShapeDtypeStruct((B, h2, w2, c_tot), jnp.float32),
        grid=(B,),
        in_specs=[
            pl.BlockSpec((1, n1, c_in), lambda b: (b, 0, 0)),
            pl.BlockSpec((1, n2, c_sk), lambda b: (b, 0, 0)),
            pl.BlockSpec((n2, n1), lambda b: (0, 0)),
            pl.BlockSpec(params["ag_wg"].shape, lambda b: (0, 0)),
            pl.BlockSpec(params["ag_bg"].shape, lambda b: (0, 0)),
            pl.BlockSpec(params["ag_wx"].shape, lambda b: (0, 0)),
            pl.BlockSpec(params["ag_bx"].shape, lambda b: (0, 0)),
            pl.BlockSpec(params["ag_wp"].shape, lambda b: (0, 0)),
            pl.BlockSpec(params["ag_bp"].shape, lambda b: (0, 0)),
        ],
        out_specs=pl.BlockSpec((1, h2, w2, c_tot), lambda b: (b, 0, 0, 0)),
        compiler_params=pltpu.CompilerParams(dimension_semantics=("parallel",)),
    )(x1p, x2p, u, params["ag_wg"], params["ag_bg"], params["ag_wx"],
      params["ag_bx"], params["ag_wp"], params["ag_bp"])


# ----------------------------------------------------------------------------
# Kernel 2: full ResnetBlock — GN(1)+SiLU, 3x3 conv (in-VMEM pad + im2col + one
# matmul), GN(1)+SiLU, 3x3 conv, residual. Output channel-major (lane-dense).
# ----------------------------------------------------------------------------
def resblock_kernel(xc_ref, g1w_ref, g1b_ref, w1_ref, b1_ref,
                    g2w_ref, g2b_ref, w2_ref, b2_ref, o_ref, pad_ref):
    _, H, W, Cc = xc_ref.shape
    Co = o_ref.shape[1]
    HW = H * W
    eps = 1e-5

    def gn_silu(v, gamma, beta):
        # GroupNorm(num_groups=1): single-pass sum / sum-of-squares stats, affine, SiLU.
        n = float(v.size)
        s1 = jnp.sum(v)
        s2 = jnp.sum(v * v)
        mu = s1 / n
        var = s2 / n - mu * mu
        h = (v - mu) * jax.lax.rsqrt(var + eps)
        h = h * gamma + beta
        return h * jax.nn.sigmoid(h)

    def conv3x3(h3, w_flat, bias):
        # zero padding lives in the VMEM scratch; im2col + ONE MXU matmul (K = 9*Cin).
        ci = h3.shape[-1]
        pad_ref[1:H + 1, 1:W + 1, :] = h3
        xp = pad_ref[...]
        cols = [xp[kh:kh + H, kw:kw + W, :].reshape(HW, ci)
                for kh in range(3) for kw in range(3)]
        patch = jnp.concatenate(cols, axis=-1)                     # [HW, 9*ci]
        return jnp.dot(patch, w_flat, preferred_element_type=jnp.float32) + bias

    pad_ref[...] = jnp.zeros_like(pad_ref)   # zero border once; interior overwritten per conv

    xc3 = xc_ref[0]                                                  # [H, W, Cc]
    h1 = gn_silu(xc3, g1w_ref[...], g1b_ref[...])
    a1 = conv3x3(h1, w1_ref[...], b1_ref[...])                       # [HW, Co]
    h2 = gn_silu(a1, g2w_ref[...], g2b_ref[...])
    a2 = conv3x3(h2.reshape(H, W, Co), w2_ref[...], b2_ref[...])     # [HW, Co]
    out = a2 + xc3.reshape(HW, Cc)                                   # residual (res_conv = Identity)
    o_ref[0] = jnp.transpose(out)                                    # [Co, HW]: lane-dense NCHW store


def resnet_block(xc, p):
    B, H, W, Cc = xc.shape
    Co = p["conv1_w"].shape[-1]
    assert Cc % 32 != 0 and Co % 32 != 0, "only num_groups=1 GroupNorm implemented"
    assert Cc == Co, "res_conv must be nn.Identity in this config"
    w1f = p["conv1_w"].reshape(9 * Cc, Co)
    w2f = p["conv2_w"].reshape(9 * Co, Co)
    return pl.pallas_call(
        resblock_kernel,
        out_shape=jax.ShapeDtypeStruct((B, Co, H * W), jnp.float32),
        grid=(B,),
        in_specs=[
            pl.BlockSpec((1, H, W, Cc), lambda b: (b, 0, 0, 0)),
            pl.BlockSpec((1, Cc), lambda b: (0, 0)),
            pl.BlockSpec((1, Cc), lambda b: (0, 0)),
            pl.BlockSpec((9 * Cc, Co), lambda b: (0, 0)),
            pl.BlockSpec((1, Co), lambda b: (0, 0)),
            pl.BlockSpec((1, Co), lambda b: (0, 0)),
            pl.BlockSpec((1, Co), lambda b: (0, 0)),
            pl.BlockSpec((9 * Co, Co), lambda b: (0, 0)),
            pl.BlockSpec((1, Co), lambda b: (0, 0)),
        ],
        out_specs=pl.BlockSpec((1, Co, H * W), lambda b: (b, 0, 0)),
        scratch_shapes=[pltpu.VMEM((H + 2, W + 2, Cc), jnp.float32)],
        compiler_params=pltpu.CompilerParams(dimension_semantics=("parallel",)),
    )(xc, p["gn1_w"].reshape(1, Cc), p["gn1_b"].reshape(1, Cc), w1f,
      p["conv1_b"].reshape(1, Co), p["gn2_w"].reshape(1, Co),
      p["gn2_b"].reshape(1, Co), w2f, p["conv2_b"].reshape(1, Co))


# ----------------------------------------------------------------------------
# Full AttentionUp forward (NCHW in / NCHW out)
# ----------------------------------------------------------------------------
def attention_up_forward(x1, x2, params):
    B, c_in, H1, W1 = x1.shape
    _, c_sk, H2, W2 = x2.shape
    assert c_in == c_sk, "AttentionGate(F_g=skip_channels) on upsampled x1 needs in==skip"

    # NCHW -> pixel-major [B, H*W, C]  (one XLA copy each; all other glue is in-kernel).
    x1p = jnp.transpose(x1, (0, 2, 3, 1)).reshape(B, H1 * W1, c_in).astype(jnp.float32)
    x2p = jnp.transpose(x2, (0, 2, 3, 1)).reshape(B, H2 * W2, c_sk).astype(jnp.float32)
    u = _upsample_pad_matrix(H2, W2, H1, W1)                        # [H2*W2, H1*W1]

    xc = upsample_attention_concat(x1p, x2p, u, params, H2, W2)     # [B, H2, W2, c_in+c_sk]
    out = resnet_block(xc, params)                                  # [B, c_out, H2*W2]
    return out.reshape(B, -1, H2, W2)                               # NCHW (free reshape)


# ----------------------------------------------------------------------------
# Deterministic synthetic parameters (shapes per the module __init__)
# ----------------------------------------------------------------------------
def init_params(key, c_in, c_skip, c_out):
    f_int = c_out // 2
    c_cat = c_in + c_skip
    ks = iter(jax.random.split(key, 24))

    def rnd(shape, scale):
        return scale * jax.random.normal(next(ks), shape, dtype=jnp.float32)

    eps_bn = 1e-5

    def fold_bn(w, b, gamma, beta):
        # BatchNorm2d, inference mode, default running stats (mean=0, var=1), folded.
        s = gamma / jnp.sqrt(1.0 + eps_bn)
        return w * s[None, :], b * s + beta

    wg, bg = fold_bn(rnd((c_skip, f_int), 0.5), rnd((f_int,), 0.2),
                     1.0 + rnd((f_int,), 0.1), rnd((f_int,), 0.1))
    wx, bx = fold_bn(rnd((c_skip, f_int), 0.5), rnd((f_int,), 0.2),
                     1.0 + rnd((f_int,), 0.1), rnd((f_int,), 0.1))
    wp, bp = fold_bn(rnd((f_int, 1), 0.5), rnd((1,), 0.2),
                     1.0 + rnd((1,), 0.1), rnd((1,), 0.1))

    return {
        "ag_wg": wg, "ag_bg": bg.reshape(1, f_int),
        "ag_wx": wx, "ag_bx": bx.reshape(1, f_int),
        "ag_wp": wp.reshape(1, f_int), "ag_bp": bp.reshape(1, 1),
        "gn1_w": 1.0 + rnd((c_cat,), 0.1), "gn1_b": rnd((c_cat,), 0.1),
        "conv1_w": rnd((3, 3, c_cat, c_out), 1.0 / np.sqrt(9 * c_cat)),
        "conv1_b": rnd((c_out,), 0.1),
        "gn2_w": 1.0 + rnd((c_out,), 0.1), "gn2_b": rnd((c_out,), 0.1),
        "conv2_w": rnd((3, 3, c_out, c_out), 1.0 / np.sqrt(9 * c_out)),
        "conv2_b": rnd((c_out,), 0.1),
    }


if __name__ == "__main__":
    B, C_IN, C_SKIP, C_OUT = 2, 4, 4, 8
    H1 = W1 = 8      # x1 spatial (before x2 upsample)
    H2 = W2 = 16     # x2 (skip) spatial

    key = jax.random.PRNGKey(0)
    k_x1, k_x2, k_p = jax.random.split(key, 3)
    x1 = jax.random.normal(k_x1, (B, C_IN, H1, W1), dtype=jnp.float32)    # NCHW
    x2 = jax.random.normal(k_x2, (B, C_SKIP, H2, W2), dtype=jnp.float32)  # NCHW
    params = init_params(k_p, C_IN, C_SKIP, C_OUT)

    out = attention_up_forward(x1, x2, params)
    out = jax.block_until_ready(out)

    assert out.shape == (B, C_OUT, H2, W2), out.shape
    assert bool(jnp.isfinite(out).all())
    print("KERNEL_OK")
</pallas_src>

<mosaic_0001>
module attributes {stable_mosaic.version = 11 : i64} {
  func.func @upgate_kernel(%arg0: i32, %arg1: memref<1x64x4xf32, #tpu.memory_space<vmem>>, %arg2: memref<1x256x4xf32, #tpu.memory_space<vmem>>, %arg3: memref<256x64xf32, #tpu.memory_space<vmem>>, %arg4: memref<4x4xf32, #tpu.memory_space<vmem>>, %arg5: memref<1x4xf32, #tpu.memory_space<vmem>>, %arg6: memref<4x4xf32, #tpu.memory_space<vmem>>, %arg7: memref<1x4xf32, #tpu.memory_space<vmem>>, %arg8: memref<1x4xf32, #tpu.memory_space<vmem>>, %arg9: memref<1x1xf32, #tpu.memory_space<vmem>>, %arg10: memref<1x16x16x8xf32, #tpu.memory_space<vmem>>) attributes {dimension_semantics = [#tpu.dimension_semantics<parallel>], iteration_bounds = array<i64: 2>, scalar_prefetch = 0 : i64, scratch_operands = 0 : i64, tpu.core_type = #tpu.core_type<tc>, window_params = [{transform_indices = @transform_0, window_bounds = array<i64: 1, 64, 4>}, {transform_indices = @transform_1, window_bounds = array<i64: 1, 256, 4>}, {pipeline_mode = #tpu.pipeline_mode<synchronous>, transform_indices = @transform_2, window_bounds = array<i64: 256, 64>}, {pipeline_mode = #tpu.pipeline_mode<synchronous>, transform_indices = @transform_3, window_bounds = array<i64: 4, 4>}, {pipeline_mode = #tpu.pipeline_mode<synchronous>, transform_indices = @transform_4, window_bounds = array<i64: 1, 4>}, {pipeline_mode = #tpu.pipeline_mode<synchronous>, transform_indices = @transform_5, window_bounds = array<i64: 4, 4>}, {pipeline_mode = #tpu.pipeline_mode<synchronous>, transform_indices = @transform_6, window_bounds = array<i64: 1, 4>}, {pipeline_mode = #tpu.pipeline_mode<synchronous>, transform_indices = @transform_7, window_bounds = array<i64: 1, 4>}, {pipeline_mode = #tpu.pipeline_mode<synchronous>, transform_indices = @transform_8, window_bounds = array<i64: 1, 1>}, {transform_indices = @transform_9, window_bounds = array<i64: 1, 16, 16, 8>}]} {
    %c0 = arith.constant 0 : index
    %c0_0 = arith.constant 0 : index
    %c0_1 = arith.constant 0 : index
    %0 = vector.load %arg1[%c0, %c0_0, %c0_1] : memref<1x64x4xf32, #tpu.memory_space<vmem>>, vector<1x64x4xf32>
    %1 = vector.shape_cast %0 : vector<1x64x4xf32> to vector<64x4xf32>
    %c0_2 = arith.constant 0 : index
    %c0_3 = arith.constant 0 : index
    %c0_4 = arith.constant 0 : index
    %2 = vector.load %arg2[%c0_2, %c0_3, %c0_4] : memref<1x256x4xf32, #tpu.memory_space<vmem>>, vector<1x256x4xf32>
    %3 = vector.shape_cast %2 : vector<1x256x4xf32> to vector<256x4xf32>
    %c0_5 = arith.constant 0 : index
    %c0_6 = arith.constant 0 : index
    %4 = vector.load %arg3[%c0_5, %c0_6] : memref<256x64xf32, #tpu.memory_space<vmem>>, vector<256x64xf32>
    %cst = arith.constant dense<0.000000e+00> : vector<256x4xf32>
    %5 = tpu.matmul %4, %1, %cst {dimension_numbers = #tpu.dot_dimension_numbers<[1], [0], [0], [1], [0, 0, 1, 1], [], []>} : vector<256x64xf32>, vector<64x4xf32>, vector<256x4xf32> -> vector<256x4xf32>
    %c0_7 = arith.constant 0 : index
    %c0_8 = arith.constant 0 : index
    %6 = vector.load %arg4[%c0_7, %c0_8] : memref<4x4xf32, #tpu.memory_space<vmem>>, vector<4x4xf32>
    %cst_9 = arith.constant dense<0.000000e+00> : vector<256x4xf32>
    %7 = tpu.matmul %5, %6, %cst_9 {dimension_numbers = #tpu.dot_dimension_numbers<[1], [0], [0], [1], [0, 0, 1, 1], [], []>} : vector<256x4xf32>, vector<4x4xf32>, vector<256x4xf32> -> vector<256x4xf32>
    %c0_10 = arith.constant 0 : index
    %c0_11 = arith.constant 0 : index
    %8 = vector.load %arg5[%c0_10, %c0_11] : memref<1x4xf32, #tpu.memory_space<vmem>>, vector<1x4xf32>
    %9 = vector.broadcast %8 : vector<1x4xf32> to vector<256x4xf32>
    %10 = arith.addf %7, %9 : vector<256x4xf32>
    %c0_12 = arith.constant 0 : index
    %c0_13 = arith.constant 0 : index
    %11 = vector.load %arg6[%c0_12, %c0_13] : memref<4x4xf32, #tpu.memory_space<vmem>>, vector<4x4xf32>
    %cst_14 = arith.constant dense<0.000000e+00> : vector<256x4xf32>
    %12 = tpu.matmul %3, %11, %cst_14 {dimension_numbers = #tpu.dot_dimension_numbers<[1], [0], [0], [1], [0, 0, 1, 1], [], []>} : vector<256x4xf32>, vector<4x4xf32>, vector<256x4xf32> -> vector<256x4xf32>
    %c0_15 = arith.constant 0 : index
    %c0_16 = arith.constant 0 : index
    %13 = vector.load %arg7[%c0_15, %c0_16] : memref<1x4xf32, #tpu.memory_space<vmem>>, vector<1x4xf32>
    %14 = vector.broadcast %13 : vector<1x4xf32> to vector<256x4xf32>
    %15 = arith.addf %12, %14 : vector<256x4xf32>
    %16 = arith.addf %10, %15 : vector<256x4xf32>
    %cst_17 = arith.constant 0.000000e+00 : f32
    %17 = vector.broadcast %cst_17 : f32 to vector<256x4xf32>
    %18 = arith.maximumf %16, %17 : vector<256x4xf32>
    %c0_18 = arith.constant 0 : index
    %c0_19 = arith.constant 0 : index
    %19 = vector.load %arg8[%c0_18, %c0_19] : memref<1x4xf32, #tpu.memory_space<vmem>>, vector<1x4xf32>
    %20 = vector.broadcast %19 : vector<1x4xf32> to vector<256x4xf32>
    %21 = arith.mulf %18, %20 : vector<256x4xf32>
    %cst_20 = arith.constant dense<0.000000e+00> : vector<256xf32>
    %22 = vector.multi_reduction <add>, %21, %cst_20 [1] : vector<256x4xf32> to vector<256xf32>
    %23 = vector.shape_cast %22 : vector<256xf32> to vector<256x1xf32>
    %c0_21 = arith.constant 0 : index
    %c0_22 = arith.constant 0 : index
    %24 = vector.load %arg9[%c0_21, %c0_22] : memref<1x1xf32, #tpu.memory_space<vmem>>, vector<1x1xf32>
    %25 = vector.broadcast %24 : vector<1x1xf32> to vector<256x1xf32>
    %26 = arith.addf %23, %25 : vector<256x1xf32>
    %27 = arith.negf %26 : vector<256x1xf32>
    %28 = math.exp %27 : vector<256x1xf32>
    %cst_23 = arith.constant 1.000000e+00 : f32
    %29 = vector.broadcast %cst_23 : f32 to vector<256x1xf32>
    %30 = arith.addf %29, %28 : vector<256x1xf32>
    %31 = arith.divf %29, %30 : vector<256x1xf32>
    %32 = vector.broadcast %31 : vector<256x1xf32> to vector<256x4xf32>
    %33 = arith.mulf %3, %32 : vector<256x4xf32>
    %34 = tpu.concatenate %33, %5 in 1 : vector<256x4xf32>, vector<256x4xf32> -> vector<256x8xf32>
    %35 = vector.shape_cast %34 : vector<256x8xf32> to vector<16x16x8xf32>
    %c0_24 = arith.constant 0 : index
    %c0_25 = arith.constant 0 : index
    %c0_26 = arith.constant 0 : index
    %c0_27 = arith.constant 0 : index
    %36 = vector.load %arg10[%c0_24, %c0_25, %c0_26, %c0_27] : memref<1x16x16x8xf32, #tpu.memory_space<vmem>>, vector<1x16x16x8xf32>
    %37 = vector.shape_cast %36 : vector<1x16x16x8xf32> to vector<16x16x8xf32>
    %38 = vector.shape_cast %35 : vector<16x16x8xf32> to vector<1x16x16x8xf32>
    tpu.vector_store %arg10[%c0_24, %c0_25, %c0_26, %c0_27], %38 {strides = array<i32>} : memref<1x16x16x8xf32, #tpu.memory_space<vmem>>, vector<1x16x16x8xf32>,
    return
  }
  func.func @transform_0(%arg0: i32) -> (i32, i32, i32) {
    %c0_i32 = arith.constant 0 : i32
    %c0_i32_0 = arith.constant 0 : i32
    %c0_i32_1 = arith.constant 0 : i32
    return %arg0, %c0_i32, %c0_i32_0 : i32, i32, i32
  }
  func.func @transform_1(%arg0: i32) -> (i32, i32, i32) {
    %c0_i32 = arith.constant 0 : i32
    %c0_i32_0 = arith.constant 0 : i32
    %c0_i32_1 = arith.constant 0 : i32
    return %arg0, %c0_i32, %c0_i32_0 : i32, i32, i32
  }
  func.func @transform_2(%arg0: i32) -> (i32, i32) {
    %c0_i32 = arith.constant 0 : i32
    %c0_i32_0 = arith.constant 0 : i32
    %c0_i32_1 = arith.constant 0 : i32
    return %c0_i32, %c0_i32_0 : i32, i32
  }
  func.func @transform_3(%arg0: i32) -> (i32, i32) {
    %c0_i32 = arith.constant 0 : i32
    %c0_i32_0 = arith.constant 0 : i32
    %c0_i32_1 = arith.constant 0 : i32
    return %c0_i32, %c0_i32_0 : i32, i32
  }
  func.func @transform_4(%arg0: i32) -> (i32, i32) {
    %c0_i32 = arith.constant 0 : i32
    %c0_i32_0 = arith.constant 0 : i32
    %c0_i32_1 = arith.constant 0 : i32
    return %c0_i32, %c0_i32_0 : i32, i32
  }
  func.func @transform_5(%arg0: i32) -> (i32, i32) {
    %c0_i32 = arith.constant 0 : i32
    %c0_i32_0 = arith.constant 0 : i32
    %c0_i32_1 = arith.constant 0 : i32
    return %c0_i32, %c0_i32_0 : i32, i32
  }
  func.func @transform_6(%arg0: i32) -> (i32, i32) {
    %c0_i32 = arith.constant 0 : i32
    %c0_i32_0 = arith.constant 0 : i32
    %c0_i32_1 = arith.constant 0 : i32
    return %c0_i32, %c0_i32_0 : i32, i32
  }
  func.func @transform_7(%arg0: i32) -> (i32, i32) {
    %c0_i32 = arith.constant 0 : i32
    %c0_i32_0 = arith.constant 0 : i32
    %c0_i32_1 = arith.constant 0 : i32
    return %c0_i32, %c0_i32_0 : i32, i32
  }
  func.func @transform_8(%arg0: i32) -> (i32, i32) {
    %c0_i32 = arith.constant 0 : i32
    %c0_i32_0 = arith.constant 0 : i32
    %c0_i32_1 = arith.constant 0 : i32
    return %c0_i32, %c0_i32_0 : i32, i32
  }
  func.func @transform_9(%arg0: i32) -> (i32, i32, i32, i32) {
    %c0_i32 = arith.constant 0 : i32
    %c0_i32_0 = arith.constant 0 : i32
    %c0_i32_1 = arith.constant 0 : i32
    %c0_i32_2 = arith.constant 0 : i32
    return %arg0, %c0_i32, %c0_i32_0, %c0_i32_1 : i32, i32, i32, i32
  }
}

</mosaic_0001>

<llo_original>
// kernel: tpu_custom_call.1
$region0: #{tpu_custom_call.1}
  #allocation0 [shape = 'u32[]', space=smem, size = 0x4, offset = 0x4, fixed_abs, tag = 'smem constant byte address 0x4 - core index']
  #allocation1 [shape = 'u32[72,128]{1,0:T(1,128)}', space=vmem, size = 0x9000, scoped, tag = 'internal scratch']
  #allocation2 [shape = 'f32[1,1]{1,0:T(1,128)S(1)}', space=vmem, size = 0x200, scoped, tag = 'scoped memory for tpu_custom_call.1']
  %s0 = inlined_call_operand.vmem [shape: f32[2,64,4], index: 0, kind: input, shape index: {}]
  %s1 = inlined_call_operand.vmem [shape: f32[2,256,4], index: 1, kind: input, shape index: {}]
  %s2 = inlined_call_operand.vmem [shape: f32[256,64], index: 2, kind: input, shape index: {}]
  %s3 = inlined_call_operand.vmem [shape: f32[4,4], index: 3, kind: input, shape index: {}]
  %s4 = inlined_call_operand.vmem [shape: f32[1,4], index: 4, kind: input, shape index: {}]
  %s5 = inlined_call_operand.vmem [shape: f32[4,4], index: 5, kind: input, shape index: {}]
  %s6 = inlined_call_operand.vmem [shape: f32[1,4], index: 6, kind: input, shape index: {}]
  %s7 = inlined_call_operand.vmem [shape: f32[1,4], index: 7, kind: input, shape index: {}]
  %s8 = inlined_call_operand.<no memory space> [shape: f32[1,1], index: 8, kind: input, shape index: {}]
  %s9 = inlined_call_operand.vmem [shape: f32[2,16,16,8], index: 9, kind: output, shape index: {}]
  %s10 = sld [smem:[#allocation0]]
  $region69: #{tpu_custom_call.1} parent=0
    _
  %s12 = ssub.s32 1, %s10
  %s13 = scalar_select 0, %s12, %s10
  %v14 = vstv %s8
  %15 = vst [vmem:[#allocation2] sm:$0x1] %v14
  loop: start=0, step=1, limit=4
  $region2: #{tpu_custom_call.1} parent=0 // loop_pre_header
    _
  $region3: #{tpu_custom_call.1} parent=0 // loop_header
    %s17 = sphi 0, %s21
    %p18 = scmp.ge.s32.totalorder %s17, 4
    %s27 = sphi 0, %s29
    %s30 = sphi 0, %s27
    %s31 = sphi 0, %s30
    %s47 = sphi 0, %s31
    %s53 = sphi 0, %s55
    %s56 = sphi 0, %s53
    %s57 = sphi 0, %s56
    %s73 = sphi 0, %s57
    %s77 = sphi 0, %s77
    %s79 = sphi 0, %s77
    %s80 = sphi 0, %s79
    %s94 = sphi 0, %s80
    %s98 = sphi 0, %s98
    %s100 = sphi 0, %s98
    %s101 = sphi 0, %s100
    %s115 = sphi 0, %s101
    %s119 = sphi 0, %s119
    %s121 = sphi 0, %s119
    %s122 = sphi 0, %s121
    %s136 = sphi 0, %s122
    %s140 = sphi 0, %s140
    %s142 = sphi 0, %s140
    %s143 = sphi 0, %s142
    %s157 = sphi 0, %s143
    %s161 = sphi 0, %s161
    %s163 = sphi 0, %s161
    %s164 = sphi 0, %s163
    %s178 = sphi 0, %s164
    %s182 = sphi 0, %s182
    %s184 = sphi 0, %s182
    %s185 = sphi 0, %s184
    %s199 = sphi 0, %s185
    %s203 = sphi 0, %s203
    %s205 = sphi 0, %s203
    %s206 = sphi 0, %s205
    %s220 = sphi 0, %s206
    %s226 = sphi 0, %s228
    %s229 = sphi 0, %s226
    %s230 = sphi 0, %s229
    %s246 = sphi 0, %s230
  $region4: #{tpu_custom_call.1} parent=0 // loop_header_branch
    %20 = sbr.rel (%p18) target = $region8
  $region5: #{tpu_custom_call.1} parent=0 // loop_body
    %s22 = ssub.s32 %s17, 1
    %s23 = ssub.s32 %s17, 2
    %s24 = sadd.s32 %s17, 1
    %s25 = ssub.s32 %s17, %s24
    %p26 = scmp.eq.s32.totalorder %s25, 0
    %s28 = sadd.s32 %s27, 1
    %s29 = scalar_select %p26, %s27, %s28
    %p32 = pneg %p26
    %p33 = scmp.eq.s32.totalorder %s17, 1
    %p34 = por %p32, %p33
    %p35 = scmp.ne.s32.totalorder %s27, %s30
    %p36 = scmp.eq.s32.totalorder %s17, 0
    %p37 = por %p35, %p36
    %p38 = scmp.ne.s32.totalorder %s27, %s30
    %p39 = scmp.eq.s32.totalorder %s22, 1
    %p40 = por %p38, %p39
    %p41 = scmp.ne.s32.totalorder %s30, %s31
    %p42 = scmp.eq.s32.totalorder %s22, 0
    %p43 = por %p41, %p42
    %p44 = scmp.ne.s32.totalorder %s30, %s31
    %p45 = scmp.eq.s32.totalorder %s23, 1
    %p46 = por %p44, %p45
    %p48 = scmp.ne.s32.totalorder %s31, %s47
    %p49 = scmp.eq.s32.totalorder %s23, 0
    %p50 = por %p48, %p49
    %s51 = ssub.s32 %s17, %s24
    %p52 = scmp.eq.s32.totalorder %s51, 0
    %s54 = sadd.s32 %s53, 1
    %s55 = scalar_select %p52, %s53, %s54
    %p58 = pneg %p52
    %p59 = scmp.eq.s32.totalorder %s17, 1
    %p60 = por %p58, %p59
    %p61 = scmp.ne.s32.totalorder %s53, %s56
    %p62 = scmp.eq.s32.totalorder %s17, 0
    %p63 = por %p61, %p62
    %p64 = scmp.ne.s32.totalorder %s53, %s56
    %p65 = scmp.eq.s32.totalorder %s22, 1
    %p66 = por %p64, %p65
    %p67 = scmp.ne.s32.totalorder %s56, %s57
    %p68 = scmp.eq.s32.totalorder %s22, 0
    %p69 = por %p67, %p68
    %p70 = scmp.ne.s32.totalorder %s56, %s57
    %p71 = scmp.eq.s32.totalorder %s23, 1
    %p72 = por %p70, %p71
    %p74 = scmp.ne.s32.totalorder %s57, %s73
    %p75 = scmp.eq.s32.totalorder %s23, 0
    %p76 = por %p74, %p75
    %s78 = sadd.s32 %s77, 1
    %p81 = scmp.eq.s32.totalorder %s17, 1
    %p82 = scmp.ne.s32.totalorder %s77, %s79
    %p83 = scmp.eq.s32.totalorder %s17, 0
    %p84 = por %p82, %p83
    %p85 = scmp.ne.s32.totalorder %s77, %s79
    %p86 = scmp.eq.s32.totalorder %s22, 1
    %p87 = por %p85, %p86
    %p88 = scmp.ne.s32.totalorder %s79, %s80
    %p89 = scmp.eq.s32.totalorder %s22, 0
    %p90 = por %p88, %p89
    %p91 = scmp.ne.s32.totalorder %s79, %s80
    %p92 = scmp.eq.s32.totalorder %s23, 1
    %p93 = por %p91, %p92
    %p95 = scmp.ne.s32.totalorder %s80, %s94
    %p96 = scmp.eq.s32.totalorder %s23, 0
    %p97 = por %p95, %p96
    %s99 = sadd.s32 %s98, 1
    %p102 = scmp.eq.s32.totalorder %s17, 1
    %p103 = scmp.ne.s32.totalorder %s98, %s100
    %p104 = scmp.eq.s32.totalorder %s17, 0
    %p105 = por %p103, %p104
    %p106 = scmp.ne.s32.totalorder %s98, %s100
    %p107 = scmp.eq.s32.totalorder %s22, 1
    %p108 = por %p106, %p107
    %p109 = scmp.ne.s32.totalorder %s100, %s101
    %p110 = scmp.eq.s32.totalorder %s22, 0
    %p111 = por %p109, %p110
    %p112 = scmp.ne.s32.totalorder %s100, %s101
    %p113 = scmp.eq.s32.totalorder %s23, 1
    %p114 = por %p112, %p113
    %p116 = scmp.ne.s32.totalorder %s101, %s115
    %p117 = scmp.eq.s32.totalorder %s23, 0
    %p118 = por %p116, %p117
    %s120 = sadd.s32 %s119, 1
    %p123 = scmp.eq.s32.totalorder %s17, 1
    %p124 = scmp.ne.s32.totalorder %s119, %s121
    %p125 = scmp.eq.s32.totalorder %s17, 0
    %p126 = por %p124, %p125
    %p127 = scmp.ne.s32.totalorder %s119, %s121
    %p128 = scmp.eq.s32.totalorder %s22, 1
    %p129 = por %p127, %p128
    %p130 = scmp.ne.s32.totalorder %s121, %s122
    %p131 = scmp.eq.s32.totalorder %s22, 0
    %p132 = por %p130, %p131
    %p133 = scmp.ne.s32.totalorder %s121, %s122
    %p134 = scmp.eq.s32.totalorder %s23, 1
    %p135 = por %p133, %p134
    %p137 = scmp.ne.s32.totalorder %s122, %s136
    %p138 = scmp.eq.s32.totalorder %s23, 0
    %p139 = por %p137, %p138
    %s141 = sadd.s32 %s140, 1
    %p144 = scmp.eq.s32.totalorder %s17, 1
    %p145 = scmp.ne.s32.totalorder %s140, %s142
    %p146 = scmp.eq.s32.totalorder %s17, 0
    %p147 = por %p145, %p146
    %p148 = scmp.ne.s32.totalorder %s140, %s142
    %p149 = scmp.eq.s32.totalorder %s22, 1
    %p150 = por %p148, %p149
    %p151 = scmp.ne.s32.totalorder %s142, %s143
    %p152 = scmp.eq.s32.totalorder %s22, 0
    %p153 = por %p151, %p152
    %p154 = scmp.ne.s32.totalorder %s142, %s143
    %p155 = scmp.eq.s32.totalorder %s23, 1
    %p156 = por %p154, %p155
    %p158 = scmp.ne.s32.totalorder %s143, %s157
    %p159 = scmp.eq.s32.totalorder %s23, 0
    %p160 = por %p158, %p159
    %s162 = sadd.s32 %s161, 1
    %p165 = scmp.eq.s32.totalorder %s17, 1
    %p166 = scmp.ne.s32.totalorder %s161, %s163
    %p167 = scmp.eq.s32.totalorder %s17, 0
    %p168 = por %p166, %p167
    %p169 = scmp.ne.s32.totalorder %s161, %s163
    %p170 = scmp.eq.s32.totalorder %s22, 1
    %p171 = por %p169, %p170
    %p172 = scmp.ne.s32.totalorder %s163, %s164
    %p173 = scmp.eq.s32.totalorder %s22, 0
    %p174 = por %p172, %p173
    %p175 = scmp.ne.s32.totalorder %s163, %s164
    %p176 = scmp.eq.s32.totalorder %s23, 1
    %p177 = por %p175, %p176
    %p179 = scmp.ne.s32.totalorder %s164, %s178
    %p180 = scmp.eq.s32.totalorder %s23, 0
    %p181 = por %p179, %p180
    %s183 = sadd.s32 %s182, 1
    %p186 = scmp.eq.s32.totalorder %s17, 1
    %p187 = scmp.ne.s32.totalorder %s182, %s184
    %p188 = scmp.eq.s32.totalorder %s17, 0
    %p189 = por %p187, %p188
    %p190 = scmp.ne.s32.totalorder %s182, %s184
    %p191 = scmp.eq.s32.totalorder %s22, 1
    %p192 = por %p190, %p191
    %p193 = scmp.ne.s32.totalorder %s184, %s185
    %p194 = scmp.eq.s32.totalorder %s22, 0
    %p195 = por %p193, %p194
    %p196 = scmp.ne.s32.totalorder %s184, %s185
    %p197 = scmp.eq.s32.totalorder %s23, 1
    %p198 = por %p196, %p197
    %p200 = scmp.ne.s32.totalorder %s185, %s199
    %p201 = scmp.eq.s32.totalorder %s23, 0
    %p202 = por %p200, %p201
    %s204 = sadd.s32 %s203, 1
    %p207 = scmp.eq.s32.totalorder %s17, 1
    %p208 = scmp.ne.s32.totalorder %s203, %s205
    %p209 = scmp.eq.s32.totalorder %s17, 0
    %p210 = por %p208, %p209
    %p211 = scmp.ne.s32.totalorder %s203, %s205
    %p212 = scmp.eq.s32.totalorder %s22, 1
    %p213 = por %p211, %p212
    %p214 = scmp.ne.s32.totalorder %s205, %s206
    %p215 = scmp.eq.s32.totalorder %s22, 0
    %p216 = por %p214, %p215
    %p217 = scmp.ne.s32.totalorder %s205, %s206
    %p218 = scmp.eq.s32.totalorder %s23, 1
    %p219 = por %p217, %p218
    %p221 = scmp.ne.s32.totalorder %s206, %s220
    %p222 = scmp.eq.s32.totalorder %s23, 0
    %p223 = por %p221, %p222
    %s224 = ssub.s32 %s17, %s24
    %p225 = scmp.eq.s32.totalorder %s224, 0
    %s227 = sadd.s32 %s226, 1
    %s228 = scalar_select %p225, %s226, %s227
    %p231 = pneg %p225
    %p232 = scmp.eq.s32.totalorder %s17, 1
    %p233 = por %p231, %p232
    %p234 = scmp.ne.s32.totalorder %s226, %s229
    %p235 = scmp.eq.s32.totalorder %s17, 0
    %p236 = por %p234, %p235
    %p237 = scmp.ne.s32.totalorder %s226, %s229
    %p238 = scmp.eq.s32.totalorder %s22, 1
    %p239 = por %p237, %p238
    %p240 = scmp.ne.s32.totalorder %s229, %s230
    %p241 = scmp.eq.s32.totalorder %s22, 0
    %p242 = por %p240, %p241
    %p243 = scmp.ne.s32.totalorder %s229, %s230
    %p244 = scmp.eq.s32.totalorder %s23, 1
    %p245 = por %p243, %p244
    %p247 = scmp.ne.s32.totalorder %s230, %s246
    %p248 = scmp.eq.s32.totalorder %s23, 0
    %p249 = por %p247, %p248
    %p250 = scmp.le.s32.totalorder 1, %s17
    %p251 = scmp.lt.s32.totalorder %s17, 3
    %p252 = pnand %p250, %p251
    %p253 = pneg %p252
    // Predicated region
    $region9: #{tpu_custom_call.1} parent=5 // pred_check
      _
    $region10: #{tpu_custom_call.1} parent=5 // pred_check_branch
      %255 = sbr.rel (%p252) target = $region12
    $region11: #{tpu_custom_call.1} parent=5 // pred_region
      %s256 = ssub.s32 %s17, 1
      // Predicated region
      $region13: #{tpu_custom_call.1} parent=11 // pred_check
        %p257 = pneg %p90
      $region14: #{tpu_custom_call.1} parent=11 // pred_check_branch
        %259 = sbr.rel (%p257) target = $region16
      $region15: #{tpu_custom_call.1} parent=11 // pred_region
        _
      $region16: #{tpu_custom_call.1} parent=11 // pred_fallthru
        _
      // Predicated region
      $region17: #{tpu_custom_call.1} parent=11 // pred_check
        %p260 = pneg %p111
      $region18: #{tpu_custom_call.1} parent=11 // pred_check_branch
        %262 = sbr.rel (%p260) target = $region20
      $region19: #{tpu_custom_call.1} parent=11 // pred_region
        _
      $region20: #{tpu_custom_call.1} parent=11 // pred_fallthru
        _
      // Predicated region
      $region21: #{tpu_custom_call.1} parent=11 // pred_check
        %p263 = pneg %p132
      $region22: #{tpu_custom_call.1} parent=11 // pred_check_branch
        %265 = sbr.rel (%p263) target = $region24
      $region23: #{tpu_custom_call.1} parent=11 // pred_region
        _
      $region24: #{tpu_custom_call.1} parent=11 // pred_fallthru
        _
      // Predicated region
      $region25: #{tpu_custom_call.1} parent=11 // pred_check
        %p266 = pneg %p153
      $region26: #{tpu_custom_call.1} parent=11 // pred_check_branch
        %268 = sbr.rel (%p266) target = $region28
      $region27: #{tpu_custom_call.1} parent=11 // pred_region
        _
      $region28: #{tpu_custom_call.1} parent=11 // pred_fallthru
        _
      // Predicated region
      $region29: #{tpu_custom_call.1} parent=11 // pred_check
        %p269 = pneg %p174
      $region30: #{tpu_custom_call.1} parent=11 // pred_check_branch
        %271 = sbr.rel (%p269) target = $region32
      $region31: #{tpu_custom_call.1} parent=11 // pred_region
        _
      $region32: #{tpu_custom_call.1} parent=11 // pred_fallthru
        _
      // Predicated region
      $region33: #{tpu_custom_call.1} parent=11 // pred_check
        %p272 = pneg %p195
      $region34: #{tpu_custom_call.1} parent=11 // pred_check_branch
        %274 = sbr.rel (%p272) target = $region36
      $region35: #{tpu_custom_call.1} parent=11 // pred_region
        _
      $region36: #{tpu_custom_call.1} parent=11 // pred_fallthru
        _
      // Predicated region
      $region37: #{tpu_custom_call.1} parent=11 // pred_check
        %p275 = pneg %p216
      $region38: #{tpu_custom_call.1} parent=11 // pred_check_branch
        %277 = sbr.rel (%p275) target = $region40
      $region39: #{tpu_custom_call.1} parent=11 // pred_region
        _
      $region40: #{tpu_custom_call.1} parent=11 // pred_fallthru
        _
    $region12: #{tpu_custom_call.1} parent=5 // pred_fallthru
      _
    %p278 = scmp.lt.s32.totalorder %s17, 2
    // Predicated region
    $region41: #{tpu_custom_call.1} parent=5 // pred_check
      %p279 = pneg %p278
    $region42: #{tpu_custom_call.1} parent=5 // pred_check_branch
      %281 = sbr.rel (%p279) target = $region44
    $region43: #{tpu_custom_call.1} parent=5 // pred_region
      // Predicated region
      $region45: #{tpu_custom_call.1} parent=43 // pred_check
        %p282 = pneg %p37
      $region46: #{tpu_custom_call.1} parent=43 // pred_check_branch
        %284 = sbr.rel (%p282) target = $region48
      $region47: #{tpu_custom_call.1} parent=43 // pred_region
        %p285 = scmp.lt.s32.totalorder %s17, 1
        %s286 = scalar_select %p285, %s17, 1
        %s287 = smul.addr %s286, 8
        %s288 = smul.addr %s287, 8
        %s289 = scalar_lea.vmem %s0, %s288
      $region48: #{tpu_custom_call.1} parent=43 // pred_fallthru
        _
      // Predicated region
      $region49: #{tpu_custom_call.1} parent=43 // pred_check
        %p290 = pneg %p63
      $region50: #{tpu_custom_call.1} parent=43 // pred_check_branch
        %292 = sbr.rel (%p290) target = $region52
      $region51: #{tpu_custom_call.1} parent=43 // pred_region
        %p293 = scmp.lt.s32.totalorder %s17, 1
        %s294 = scalar_select %p293, %s17, 1
        %s295 = smul.addr %s294, 32
        %s296 = smul.addr %s295, 8
        %s297 = scalar_lea.vmem %s1, %s296
      $region52: #{tpu_custom_call.1} parent=43 // pred_fallthru
        _
    $region44: #{tpu_custom_call.1} parent=5 // pred_fallthru
      _
    %p298 = scmp.le.s32.totalorder 1, %s17
    %p299 = scmp.lt.s32.totalorder %s17, 3
    %p300 = pnand %p298, %p299
    %p301 = pneg %p300
    // Predicated region
    $region53: #{tpu_custom_call.1} parent=5 // pred_check
      _
    $region54: #{tpu_custom_call.1} parent=5 // pred_check_branch
      %303 = sbr.rel (%p300) target = $region56
    $region55: #{tpu_custom_call.1} parent=5 // pred_region
      %s304 = ssub.s32 %s17, 1
      %p305 = scmp.lt.s32.totalorder %s22, 1
      %s306 = scalar_select %p305, %s22, 1
      %s307 = smul.addr %s306, 8
      %s308 = smul.addr %s307, 8
      %s309 = scalar_lea.vmem %s0, %s308
      %p310 = pneg %p43
      %p311 = pneg %p40
      %p312 = scmp.lt.s32.totalorder %s22, 1
      %s313 = scalar_select %p312, %s22, 1
      %s314 = smul.addr %s313, 32
      %s315 = smul.addr %s314, 8
      %s316 = scalar_lea.vmem %s1, %s315
      %p317 = pneg %p69
      %p318 = pneg %p66
      %p319 = pneg %p90
      %p320 = pneg %p87
      %p321 = pneg %p111
      %p322 = pneg %p108
      %p323 = pneg %p132
      %p324 = pneg %p129
      %p325 = pneg %p153
      %p326 = pneg %p150
      %p327 = pneg %p174
      %p328 = pneg %p171
      %p329 = pneg %p195
      %p330 = pneg %p192
      %p331 = pneg %p216
      %p332 = pneg %p213
      %p333 = pneg %p242
      %p334 = pneg %p239
      %p335 = scmp.lt.s32.totalorder %s22, 1
      %s336 = scalar_select %p335, %s22, 1
      %s337 = smul.addr %s336, 32
      %s338 = smul.addr %s337, 8
      %s339 = scalar_lea.vmem %s9, %s338
      %p340 = scmp.lt.s32.totalorder %s22, 1
      %s341 = scalar_select %p340, %s22, 1
      %s342 = smul.addr %s341, 8
      %s343 = smul.addr %s342, 8
      %s344 = scalar_lea.vmem %s0, %s343
      %p345 = scmp.lt.s32.totalorder %s22, 1
      %s346 = scalar_select %p345, %s22, 1
      %s347 = smul.addr %s346, 32
      %s348 = smul.addr %s347, 8
      %s349 = scalar_lea.vmem %s1, %s348
      %p350 = scmp.lt.s32.totalorder %s22, 1
      %s351 = scalar_select %p350, %s22, 1
      %s352 = smul.addr %s351, 32
      %s353 = smul.addr %s352, 8
      %s354 = scalar_lea.vmem %s9, %s353
      %v355 = vld [vmem:[%s344] sm:$0xff]
      %v356 = vld [vmem:[%s344 + $0x8] sm:$0xff]
      %v357 = vld [vmem:[%s344 + $0x10] sm:$0xff]
      %v358 = vld [vmem:[%s344 + $0x18] sm:$0xff]
      %v359 = vld [vmem:[%s344 + $0x20] sm:$0xff]
      %v360 = vld [vmem:[%s344 + $0x28] sm:$0xff]
      %v361 = vld [vmem:[%s344 + $0x30] sm:$0xff]
      %v362 = vld [vmem:[%s344 + $0x38] sm:$0xff]
      %v363 = vld [vmem:[%s349] sm:$0xff]
      %v364 = vld [vmem:[%s349 + $0x8] sm:$0xff]
      %v365 = vld [vmem:[%s349 + $0x10] sm:$0xff]
      %v366 = vld [vmem:[%s349 + $0x18] sm:$0xff]
      %v367 = vld [vmem:[%s349 + $0x20] sm:$0xff]
      %v368 = vld [vmem:[%s349 + $0x28] sm:$0xff]
      %v369 = vld [vmem:[%s349 + $0x30] sm:$0xff]
      %v370 = vld [vmem:[%s349 + $0x38] sm:$0xff]
      %v371 = vld [vmem:[%s349 + $0x40] sm:$0xff]
      %v372 = vld [vmem:[%s349 + $0x48] sm:$0xff]
      %v373 = vld [vmem:[%s349 + $0x50] sm:$0xff]
      %v374 = vld [vmem:[%s349 + $0x58] sm:$0xff]
      %v375 = vld [vmem:[%s349 + $0x60] sm:$0xff]
      %v376 = vld [vmem:[%s349 + $0x68] sm:$0xff]
      %v377 = vld [vmem:[%s349 + $0x70] sm:$0xff]
      %v378 = vld [vmem:[%s349 + $0x78] sm:$0xff]
      %v379 = vld [vmem:[%s349 + $0x80] sm:$0xff]
      %v380 = vld [vmem:[%s349 + $0x88] sm:$0xff]
      %v381 = vld [vmem:[%s349 + $0x90] sm:$0xff]
      %v382 = vld [vmem:[%s349 + $0x98] sm:$0xff]
      %v383 = vld [vmem:[%s349 + $0xa0] sm:$0xff]
      %v384 = vld [vmem:[%s349 + $0xa8] sm:$0xff]
      %v385 = vld [vmem:[%s349 + $0xb0] sm:$0xff]
      %v386 = vld [vmem:[%s349 + $0xb8] sm:$0xff]
      %v387 = vld [vmem:[%s349 + $0xc0] sm:$0xff]
      %v388 = vld [vmem:[%s349 + $0xc8] sm:$0xff]
      %v389 = vld [vmem:[%s349 + $0xd0] sm:$0xff]
      %v390 = vld [vmem:[%s349 + $0xd8] sm:$0xff]
      %v391 = vld [vmem:[%s349 + $0xe0] sm:$0xff]
      %v392 = vld [vmem:[%s349 + $0xe8] sm:$0xff]
      %v393 = vld [vmem:[%s349 + $0xf0] sm:$0xff]
      %v394 = vld [vmem:[%s349 + $0xf8] sm:$0xff]
      %v395 = vld [vmem:[%s2] sm:$0xff]
      %v396 = vld [vmem:[%s2 + $0x8] sm:$0xff]
      %v397 = vld [vmem:[%s2 + $0x10] sm:$0xff]
      %v398 = vld [vmem:[%s2 + $0x18] sm:$0xff]
      %v399 = vld [vmem:[%s2 + $0x20] sm:$0xff]
      %v400 = vld [vmem:[%s2 + $0x28] sm:$0xff]
      %v401 = vld [vmem:[%s2 + $0x30] sm:$0xff]
      %v402 = vld [vmem:[%s2 + $0x38] sm:$0xff]
      %v403 = vld [vmem:[%s2 + $0x40] sm:$0xff]
      %v404 = vld [vmem:[%s2 + $0x48] sm:$0xff]
      %v405 = vld [vmem:[%s2 + $0x50] sm:$0xff]
      %v406 = vld [vmem:[%s2 + $0x58] sm:$0xff]
      %v407 = vld [vmem:[%s2 + $0x60] sm:$0xff]
      %v408 = vld [vmem:[%s2 + $0x68] sm:$0xff]
      %v409 = vld [vmem:[%s2 + $0x70] sm:$0xff]
      %v410 = vld [vmem:[%s2 + $0x78] sm:$0xff]
      %v411 = vld [vmem:[%s2 + $0x80] sm:$0xff]
      %v412 = vld [vmem:[%s2 + $0x88] sm:$0xff]
      %v413 = vld [vmem:[%s2 + $0x90] sm:$0xff]
      %v414 = vld [vmem:[%s2 + $0x98] sm:$0xff]
      %v415 = vld [vmem:[%s2 + $0xa0] sm:$0xff]
      %v416 = vld [vmem:[%s2 + $0xa8] sm:$0xff]
      %v417 = vld [vmem:[%s2 + $0xb0] sm:$0xff]
      %v418 = vld [vmem:[%s2 + $0xb8] sm:$0xff]
      %v419 = vld [vmem:[%s2 + $0xc0] sm:$0xff]
      %v420 = vld [vmem:[%s2 + $0xc8] sm:$0xff]
      %v421 = vld [vmem:[%s2 + $0xd0] sm:$0xff]
      %v422 = vld [vmem:[%s2 + $0xd8] sm:$0xff]
      %v423 = vld [vmem:[%s2 + $0xe0] sm:$0xff]
      %v424 = vld [vmem:[%s2 + $0xe8] sm:$0xff]
      %v425 = vld [vmem:[%s2 + $0xf0] sm:$0xff]
      %v426 = vld [vmem:[%s2 + $0xf8] sm:$0xff]
      %vm427 = vcmask 523264
      %v429 = vsel %vm427, %v395, 0
      %v432 = vsel %vm427, %v396, 0
      %v435 = vsel %vm427, %v397, 0
      %v438 = vsel %vm427, %v398, 0
      %v441 = vsel %vm427, %v399, 0
      %v444 = vsel %vm427, %v400, 0
      %v447 = vsel %vm427, %v401, 0
      %v450 = vsel %vm427, %v402, 0
      %v453 = vsel %vm427, %v403, 0
      %v456 = vsel %vm427, %v404, 0
      %v459 = vsel %vm427, %v405, 0
      %v462 = vsel %vm427, %v406, 0
      %v465 = vsel %vm427, %v407, 0
      %v468 = vsel %vm427, %v408, 0
      %v471 = vsel %vm427, %v409, 0
      %v474 = vsel %vm427, %v410, 0
      %v477 = vsel %vm427, %v411, 0
      %v480 = vsel %vm427, %v412, 0
      %v483 = vsel %vm427, %v413, 0
      %v486 = vsel %vm427, %v414, 0
      %v489 = vsel %vm427, %v415, 0
      %v492 = vsel %vm427, %v416, 0
      %v495 = vsel %vm427, %v417, 0
      %v498 = vsel %vm427, %v418, 0
      %v501 = vsel %vm427, %v419, 0
      %v504 = vsel %vm427, %v420, 0
      %v507 = vsel %vm427, %v421, 0
      %v510 = vsel %vm427, %v422, 0
      %v513 = vsel %vm427, %v423, 0
      %v516 = vsel %vm427, %v424, 0
      %v519 = vsel %vm427, %v425, 0
      %v522 = vsel %vm427, %v426, 0
      %524 = vmatpush.msra.mxu0 0.0
      %525 = vmatpush.msra.mxu0 0.0
      %526 = vmatpush.msra.mxu0 0.0
      %527 = vmatpush.msra.mxu0 0.0
      %528 = vmatpush.msra.mxu0 0.0
      %529 = vmatpush.msra.mxu0 0.0
      %530 = vmatpush.msra.mxu0 0.0
      %531 = vmatpush.msra.mxu0 0.0
      %532 = vmatpush.msra.mxu0 %v362
      %533 = vmatpush.msra.mxu0 %v361
      %534 = vmatpush.msra.mxu0 %v360
      %535 = vmatpush.msra.mxu0 %v359
      %536 = vmatpush.msra.mxu0 %v358
      %537 = vmatpush.msra.mxu0 %v357
      %538 = vmatpush.msra.mxu0 %v356
      %539 = vmatpush.msra.mxu0 %v355
      %540 = vmatmul.f32.gmra.mxu0 %v429
      %v541 = vpop.f32.mrf.mxu0
      %v542 = vadd.f32 0.0, %v541
      %543 = vmatmul.f32.gmra.mxu0 %v432
      %v544 = vpop.f32.mrf.mxu0
      %v545 = vadd.f32 0.0, %v544
      %546 = vmatmul.f32.gmra.mxu0 %v435
      %v547 = vpop.f32.mrf.mxu0
      %v548 = vadd.f32 0.0, %v547
      %549 = vmatmul.f32.gmra.mxu0 %v438
      %v550 = vpop.f32.mrf.mxu0
      %v551 = vadd.f32 0.0, %v550
      %552 = vmatmul.f32.gmra.mxu0 %v441
      %v553 = vpop.f32.mrf.mxu0
      %v554 = vadd.f32 0.0, %v553
      %555 = vmatmul.f32.gmra.mxu0 %v444
      %v556 = vpop.f32.mrf.mxu0
      %v557 = vadd.f32 0.0, %v556
      %558 = vmatmul.f32.gmra.mxu0 %v447
      %v559 = vpop.f32.mrf.mxu0
      %v560 = vadd.f32 0.0, %v559
      %561 = vmatmul.f32.gmra.mxu0 %v450
      %v562 = vpop.f32.mrf.mxu0
      %v563 = vadd.f32 0.0, %v562
      %564 = vmatmul.f32.gmra.mxu0 %v453
      %v565 = vpop.f32.mrf.mxu0
      %v566 = vadd.f32 0.0, %v565
      %567 = vmatmul.f32.gmra.mxu0 %v456
      %v568 = vpop.f32.mrf.mxu0
      %v569 = vadd.f32 0.0, %v568
      %570 = vmatmul.f32.gmra.mxu0 %v459
      %v571 = vpop.f32.mrf.mxu0
      %v572 = vadd.f32 0.0, %v571
      %573 = vmatmul.f32.gmra.mxu0 %v462
      %v574 = vpop.f32.mrf.mxu0
      %v575 = vadd.f32 0.0, %v574
      %576 = vmatmul.f32.gmra.mxu0 %v465
      %v577 = vpop.f32.mrf.mxu0
      %v578 = vadd.f32 0.0, %v577
      %579 = vmatmul.f32.gmra.mxu0 %v468
      %v580 = vpop.f32.mrf.mxu0
      %v581 = vadd.f32 0.0, %v580
      %582 = vmatmul.f32.gmra.mxu0 %v471
      %v583 = vpop.f32.mrf.mxu0
      %v584 = vadd.f32 0.0, %v583
      %585 = vmatmul.f32.gmra.mxu0 %v474
      %v586 = vpop.f32.mrf.mxu0
      %v587 = vadd.f32 0.0, %v586
      %588 = vmatmul.f32.gmra.mxu0 %v477
      %v589 = vpop.f32.mrf.mxu0
      %v590 = vadd.f32 0.0, %v589
      %591 = vmatmul.f32.gmra.mxu0 %v480
      %v592 = vpop.f32.mrf.mxu0
      %v593 = vadd.f32 0.0, %v592
      %594 = vmatmul.f32.gmra.mxu0 %v483
      %v595 = vpop.f32.mrf.mxu0
      %v596 = vadd.f32 0.0, %v595
      %597 = vmatmul.f32.gmra.mxu0 %v486
      %v598 = vpop.f32.mrf.mxu0
      %v599 = vadd.f32 0.0, %v598
      %600 = vmatmul.f32.gmra.mxu0 %v489
      %v601 = vpop.f32.mrf.mxu0
      %v602 = vadd.f32 0.0, %v601
      %603 = vmatmul.f32.gmra.mxu0 %v492
      %v604 = vpop.f32.mrf.mxu0
      %v605 = vadd.f32 0.0, %v604
      %606 = vmatmul.f32.gmra.mxu0 %v495
      %v607 = vpop.f32.mrf.mxu0
      %v608 = vadd.f32 0.0, %v607
      %609 = vmatmul.f32.gmra.mxu0 %v498
      %v610 = vpop.f32.mrf.mxu0
      %v611 = vadd.f32 0.0, %v610
      %612 = vmatmul.f32.gmra.mxu0 %v501
      %v613 = vpop.f32.mrf.mxu0
      %v614 = vadd.f32 0.0, %v613
      %615 = vmatmul.f32.gmra.mxu0 %v504
      %v616 = vpop.f32.mrf.mxu0
      %v617 = vadd.f32 0.0, %v616
      %618 = vmatmul.f32.gmra.mxu0 %v507
      %v619 = vpop.f32.mrf.mxu0
      %v620 = vadd.f32 0.0, %v619
      %621 = vmatmul.f32.gmra.mxu0 %v510
      %v622 = vpop.f32.mrf.mxu0
      %v623 = vadd.f32 0.0, %v622
      %624 = vmatmul.f32.gmra.mxu0 %v513
      %v625 = vpop.f32.mrf.mxu0
      %v626 = vadd.f32 0.0, %v625
      %627 = vmatmul.f32.gmra.mxu0 %v516
      %v628 = vpop.f32.mrf.mxu0
      %v629 = vadd.f32 0.0, %v628
      %630 = vmatmul.f32.gmra.mxu0 %v519
      %v631 = vpop.f32.mrf.mxu0
      %v632 = vadd.f32 0.0, %v631
      %633 = vmatmul.f32.gmra.mxu0 %v522
      %v634 = vpop.f32.mrf.mxu0
      %v635 = vadd.f32 0.0, %v634
      %636 = vdwg.mxu0
      %v637 = vld [vmem:[%s3] sm:$0xf]
      %v638 = vld [vmem:[%s4] sm:$0x1]
      %v640 = vperm.slane %v638, 0
      %vm642 = vcmask 31744
      %v644 = vsel %vm642, %v542, 0
      %v647 = vsel %vm642, %v545, 0
      %v650 = vsel %vm642, %v548, 0
      %v653 = vsel %vm642, %v551, 0
      %v656 = vsel %vm642, %v554, 0
      %v659 = vsel %vm642, %v557, 0
      %v662 = vsel %vm642, %v560, 0
      %v665 = vsel %vm642, %v563, 0
      %v668 = vsel %vm642, %v566, 0
      %v671 = vsel %vm642, %v569, 0
      %v674 = vsel %vm642, %v572, 0
      %v677 = vsel %vm642, %v575, 0
      %v680 = vsel %vm642, %v578, 0
      %v683 = vsel %vm642, %v581, 0
      %v686 = vsel %vm642, %v584, 0
      %v689 = vsel %vm642, %v587, 0
      %v692 = vsel %vm642, %v590, 0
      %v695 = vsel %vm642, %v593, 0
      %v698 = vsel %vm642, %v596, 0
      %v701 = vsel %vm642, %v599, 0
      %v704 = vsel %vm642, %v602, 0
      %v707 = vsel %vm642, %v605, 0
      %v710 = vsel %vm642, %v608, 0
      %v713 = vsel %vm642, %v611, 0
      %v716 = vsel %vm642, %v614, 0
      %v719 = vsel %vm642, %v617, 0
      %v722 = vsel %vm642, %v620, 0
      %v725 = vsel %vm642, %v623, 0
      %v728 = vsel %vm642, %v626, 0
      %v731 = vsel %vm642, %v629, 0
      %v734 = vsel %vm642, %v632, 0
      %v737 = vsel %vm642, %v635, 0
      %vm739 = vcmask 1043456
      %v741 = vsel %vm739, %v637, 0
      %743 = vmatpush.msra.mxu0 0.0
      %744 = vmatpush.msra.mxu0 0.0
      %745 = vmatpush.msra.mxu0 0.0
      %746 = vmatpush.msra.mxu0 0.0
      %747 = vmatpush.msra.mxu0 0.0
      %748 = vmatpush.msra.mxu0 0.0
      %749 = vmatpush.msra.mxu0 0.0
      %750 = vmatpush.msra.mxu0 0.0
      %751 = vmatpush.msra.mxu0 0.0
      %752 = vmatpush.msra.mxu0 0.0
      %753 = vmatpush.msra.mxu0 0.0
      %754 = vmatpush.msra.mxu0 0.0
      %755 = vmatpush.msra.mxu0 0.0
      %756 = vmatpush.msra.mxu0 0.0
      %757 = vmatpush.msra.mxu0 0.0
      %758 = vmatpush.msra.mxu0 %v741
      %759 = vmatmul.f32.gmra.mxu0 %v644
      %v760 = vpop.f32.mrf.mxu0
      %v761 = vadd.f32 %v640, %v760
      %762 = vmatmul.f32.gmra.mxu0 %v647
      %v763 = vpop.f32.mrf.mxu0
      %v764 = vadd.f32 %v640, %v763
      %765 = vmatmul.f32.gmra.mxu0 %v650
      %v766 = vpop.f32.mrf.mxu0
      %v767 = vadd.f32 %v640, %v766
      %768 = vmatmul.f32.gmra.mxu0 %v653
      %v769 = vpop.f32.mrf.mxu0
      %v770 = vadd.f32 %v640, %v769
      %771 = vmatmul.f32.gmra.mxu0 %v656
      %v772 = vpop.f32.mrf.mxu0
      %v773 = vadd.f32 %v640, %v772
      %774 = vmatmul.f32.gmra.mxu0 %v659
      %v775 = vpop.f32.mrf.mxu0
      %v776 = vadd.f32 %v640, %v775
      %777 = vmatmul.f32.gmra.mxu0 %v662
      %v778 = vpop.f32.mrf.mxu0
      %v779 = vadd.f32 %v640, %v778
      %780 = vmatmul.f32.gmra.mxu0 %v665
      %v781 = vpop.f32.mrf.mxu0
      %v782 = vadd.f32 %v640, %v781
      %783 = vmatmul.f32.gmra.mxu0 %v668
      %v784 = vpop.f32.mrf.mxu0
      %v785 = vadd.f32 %v640, %v784
      %786 = vmatmul.f32.gmra.mxu0 %v671
      %v787 = vpop.f32.mrf.mxu0
      %v788 = vadd.f32 %v640, %v787
      %789 = vmatmul.f32.gmra.mxu0 %v674
      %v790 = vpop.f32.mrf.mxu0
      %v791 = vadd.f32 %v640, %v790
      %792 = vmatmul.f32.gmra.mxu0 %v677
      %v793 = vpop.f32.mrf.mxu0
      %v794 = vadd.f32 %v640, %v793
      %795 = vmatmul.f32.gmra.mxu0 %v680
      %v796 = vpop.f32.mrf.mxu0
      %v797 = vadd.f32 %v640, %v796
      %798 = vmatmul.f32.gmra.mxu0 %v683
      %v799 = vpop.f32.mrf.mxu0
      %v800 = vadd.f32 %v640, %v799
      %801 = vmatmul.f32.gmra.mxu0 %v686
      %v802 = vpop.f32.mrf.mxu0
      %v803 = vadd.f32 %v640, %v802
      %804 = vmatmul.f32.gmra.mxu0 %v689
      %v805 = vpop.f32.mrf.mxu0
      %v806 = vadd.f32 %v640, %v805
      %807 = vmatmul.f32.gmra.mxu0 %v692
      %v808 = vpop.f32.mrf.mxu0
      %v809 = vadd.f32 %v640, %v808
      %810 = vmatmul.f32.gmra.mxu0 %v695
      %v811 = vpop.f32.mrf.mxu0
      %v812 = vadd.f32 %v640, %v811
      %813 = vmatmul.f32.gmra.mxu0 %v698
      %v814 = vpop.f32.mrf.mxu0
      %v815 = vadd.f32 %v640, %v814
      %816 = vmatmul.f32.gmra.mxu0 %v701
      %v817 = vpop.f32.mrf.mxu0
      %v818 = vadd.f32 %v640, %v817
      %819 = vmatmul.f32.gmra.mxu0 %v704
      %v820 = vpop.f32.mrf.mxu0
      %v821 = vadd.f32 %v640, %v820
      %822 = vmatmul.f32.gmra.mxu0 %v707
      %v823 = vpop.f32.mrf.mxu0
      %v824 = vadd.f32 %v640, %v823
      %825 = vmatmul.f32.gmra.mxu0 %v710
      %v826 = vpop.f32.mrf.mxu0
      %v827 = vadd.f32 %v640, %v826
      %828 = vmatmul.f32.gmra.mxu0 %v713
      %v829 = vpop.f32.mrf.mxu0
      %v830 = vadd.f32 %v640, %v829
      %831 = vmatmul.f32.gmra.mxu0 %v716
      %v832 = vpop.f32.mrf.mxu0
      %v833 = vadd.f32 %v640, %v832
      %834 = vmatmul.f32.gmra.mxu0 %v719
      %v835 = vpop.f32.mrf.mxu0
      %v836 = vadd.f32 %v640, %v835
      %837 = vmatmul.f32.gmra.mxu0 %v722
      %v838 = vpop.f32.mrf.mxu0
      %v839 = vadd.f32 %v640, %v838
      %840 = vmatmul.f32.gmra.mxu0 %v725
      %v841 = vpop.f32.mrf.mxu0
      %v842 = vadd.f32 %v640, %v841
      %843 = vmatmul.f32.gmra.mxu0 %v728
      %v844 = vpop.f32.mrf.mxu0
      %v845 = vadd.f32 %v640, %v844
      %846 = vmatmul.f32.gmra.mxu0 %v731
      %v847 = vpop.f32.mrf.mxu0
      %v848 = vadd.f32 %v640, %v847
      %849 = vmatmul.f32.gmra.mxu0 %v734
      %v850 = vpop.f32.mrf.mxu0
      %v851 = vadd.f32 %v640, %v850
      %852 = vmatmul.f32.gmra.mxu0 %v737
      %v853 = vpop.f32.mrf.mxu0
      %v854 = vadd.f32 %v640, %v853
      %855 = vdwg.mxu0
      %v856 = vld [vmem:[%s5] sm:$0xf]
      %v857 = vld [vmem:[%s6] sm:$0x1]
      %v859 = vperm.slane %v857, 0
      %v862 = vsel %vm642, %v363, 0
      %v865 = vsel %vm642, %v364, 0
      %v868 = vsel %vm642, %v365, 0
      %v871 = vsel %vm642, %v366, 0
      %v874 = vsel %vm642, %v367, 0
      %v877 = vsel %vm642, %v368, 0
      %v880 = vsel %vm642, %v369, 0
      %v883 = vsel %vm642, %v370, 0
      %v886 = vsel %vm642, %v371, 0
      %v889 = vsel %vm642, %v372, 0
      %v892 = vsel %vm642, %v373, 0
      %v895 = vsel %vm642, %v374, 0
      %v898 = vsel %vm642, %v375, 0
      %v901 = vsel %vm642, %v376, 0
      %v904 = vsel %vm642, %v377, 0
      %v907 = vsel %vm642, %v378, 0
      %v910 = vsel %vm642, %v379, 0
      %v913 = vsel %vm642, %v380, 0
      %v916 = vsel %vm642, %v381, 0
      %v919 = vsel %vm642, %v382, 0
      %v922 = vsel %vm642, %v383, 0
      %v925 = vsel %vm642, %v384, 0
      %v928 = vsel %vm642, %v385, 0
      %v931 = vsel %vm642, %v386, 0
      %v934 = vsel %vm642, %v387, 0
      %v937 = vsel %vm642, %v388, 0
      %v940 = vsel %vm642, %v389, 0
      %v943 = vsel %vm642, %v390, 0
      %v946 = vsel %vm642, %v391, 0
      %v949 = vsel %vm642, %v392, 0
      %v952 = vsel %vm642, %v393, 0
      %v955 = vsel %vm642, %v394, 0
      %v958 = vsel %vm739, %v856, 0
      %960 = vmatpush.msra.mxu0 0.0
      %961 = vmatpush.msra.mxu0 0.0
      %962 = vmatpush.msra.mxu0 0.0
      %963 = vmatpush.msra.mxu0 0.0
      %964 = vmatpush.msra.mxu0 0.0
      %965 = vmatpush.msra.mxu0 0.0
      %966 = vmatpush.msra.mxu0 0.0
      %967 = vmatpush.msra.mxu0 0.0
      %968 = vmatpush.msra.mxu0 0.0
      %969 = vmatpush.msra.mxu0 0.0
      %970 = vmatpush.msra.mxu0 0.0
      %971 = vmatpush.msra.mxu0 0.0
      %972 = vmatpush.msra.mxu0 0.0
      %973 = vmatpush.msra.mxu0 0.0
      %974 = vmatpush.msra.mxu0 0.0
      %975 = vmatpush.msra.mxu0 %v958
      %976 = vmatmul.f32.gmra.mxu0 %v862
      %v977 = vpop.f32.mrf.mxu0
      %v978 = vadd.f32 %v859, %v977
      %979 = vmatmul.f32.gmra.mxu0 %v865
      %v980 = vpop.f32.mrf.mxu0
      %v981 = vadd.f32 %v859, %v980
      %982 = vmatmul.f32.gmra.mxu0 %v868
      %v983 = vpop.f32.mrf.mxu0
      %v984 = vadd.f32 %v859, %v983
      %985 = vmatmul.f32.gmra.mxu0 %v871
      %v986 = vpop.f32.mrf.mxu0
      %v987 = vadd.f32 %v859, %v986
      %988 = vmatmul.f32.gmra.mxu0 %v874
      %v989 = vpop.f32.mrf.mxu0
      %v990 = vadd.f32 %v859, %v989
      %991 = vmatmul.f32.gmra.mxu0 %v877
      %v992 = vpop.f32.mrf.mxu0
      %v993 = vadd.f32 %v859, %v992
      %994 = vmatmul.f32.gmra.mxu0 %v880
      %v995 = vpop.f32.mrf.mxu0
      %v996 = vadd.f32 %v859, %v995
      %997 = vmatmul.f32.gmra.mxu0 %v883
      %v998 = vpop.f32.mrf.mxu0
      %v999 = vadd.f32 %v859, %v998
      %1000 = vmatmul.f32.gmra.mxu0 %v886
      %v1001 = vpop.f32.mrf.mxu0
      %v1002 = vadd.f32 %v859, %v1001
      %1003 = vmatmul.f32.gmra.mxu0 %v889
      %v1004 = vpop.f32.mrf.mxu0
      %v1005 = vadd.f32 %v859, %v1004
      %1006 = vmatmul.f32.gmra.mxu0 %v892
      %v1007 = vpop.f32.mrf.mxu0
      %v1008 = vadd.f32 %v859, %v1007
      %1009 = vmatmul.f32.gmra.mxu0 %v895
      %v1010 = vpop.f32.mrf.mxu0
      %v1011 = vadd.f32 %v859, %v1010
      %1012 = vmatmul.f32.gmra.mxu0 %v898
      %v1013 = vpop.f32.mrf.mxu0
      %v1014 = vadd.f32 %v859, %v1013
      %1015 = vmatmul.f32.gmra.mxu0 %v901
      %v1016 = vpop.f32.mrf.mxu0
      %v1017 = vadd.f32 %v859, %v1016
      %1018 = vmatmul.f32.gmra.mxu0 %v904
      %v1019 = vpop.f32.mrf.mxu0
      %v1020 = vadd.f32 %v859, %v1019
      %1021 = vmatmul.f32.gmra.mxu0 %v907
      %v1022 = vpop.f32.mrf.mxu0
      %v1023 = vadd.f32 %v859, %v1022
      %1024 = vmatmul.f32.gmra.mxu0 %v910
      %v1025 = vpop.f32.mrf.mxu0
      %v1026 = vadd.f32 %v859, %v1025
      %1027 = vmatmul.f32.gmra.mxu0 %v913
      %v1028 = vpop.f32.mrf.mxu0
      %v1029 = vadd.f32 %v859, %v1028
      %1030 = vmatmul.f32.gmra.mxu0 %v916
      %v1031 = vpop.f32.mrf.mxu0
      %v1032 = vadd.f32 %v859, %v1031
      %1033 = vmatmul.f32.gmra.mxu0 %v919
      %v1034 = vpop.f32.mrf.mxu0
      %v1035 = vadd.f32 %v859, %v1034
      %1036 = vmatmul.f32.gmra.mxu0 %v922
      %v1037 = vpop.f32.mrf.mxu0
      %v1038 = vadd.f32 %v859, %v1037
      %1039 = vmatmul.f32.gmra.mxu0 %v925
      %v1040 = vpop.f32.mrf.mxu0
      %v1041 = vadd.f32 %v859, %v1040
      %1042 = vmatmul.f32.gmra.mxu0 %v928
      %v1043 = vpop.f32.mrf.mxu0
      %v1044 = vadd.f32 %v859, %v1043
      %1045 = vmatmul.f32.gmra.mxu0 %v931
      %v1046 = vpop.f32.mrf.mxu0
      %v1047 = vadd.f32 %v859, %v1046
      %1048 = vmatmul.f32.gmra.mxu0 %v934
      %v1049 = vpop.f32.mrf.mxu0
      %v1050 = vadd.f32 %v859, %v1049
      %1051 = vmatmul.f32.gmra.mxu0 %v937
      %v1052 = vpop.f32.mrf.mxu0
      %v1053 = vadd.f32 %v859, %v1052
      %1054 = vmatmul.f32.gmra.mxu0 %v940
      %v1055 = vpop.f32.mrf.mxu0
      %v1056 = vadd.f32 %v859, %v1055
      %1057 = vmatmul.f32.gmra.mxu0 %v943
      %v1058 = vpop.f32.mrf.mxu0
      %v1059 = vadd.f32 %v859, %v1058
      %1060 = vmatmul.f32.gmra.mxu0 %v946
      %v1061 = vpop.f32.mrf.mxu0
      %v1062 = vadd.f32 %v859, %v1061
      %1063 = vmatmul.f32.gmra.mxu0 %v949
      %v1064 = vpop.f32.mrf.mxu0
      %v1065 = vadd.f32 %v859, %v1064
      %1066 = vmatmul.f32.gmra.mxu0 %v952
      %v1067 = vpop.f32.mrf.mxu0
      %v1068 = vadd.f32 %v859, %v1067
      %1069 = vmatmul.f32.gmra.mxu0 %v955
      %v1070 = vpop.f32.mrf.mxu0
      %v1071 = vadd.f32 %v859, %v1070
      %1072 = vdwg.mxu0
      %v1073 = vadd.f32 %v761, %v978
      %v1074 = vadd.f32 %v764, %v981
      %v1075 = vadd.f32 %v767, %v984
      %v1076 = vadd.f32 %v770, %v987
      %v1077 = vadd.f32 %v773, %v990
      %v1078 = vadd.f32 %v776, %v993
      %v1079 = vadd.f32 %v779, %v996
      %v1080 = vadd.f32 %v782, %v999
      %v1081 = vadd.f32 %v785, %v1002
      %v1082 = vadd.f32 %v788, %v1005
      %v1083 = vadd.f32 %v791, %v1008
      %v1084 = vadd.f32 %v794, %v1011
      %v1085 = vadd.f32 %v797, %v1014
      %v1086 = vadd.f32 %v800, %v1017
      %v1087 = vadd.f32 %v803, %v1020
      %v1088 = vadd.f32 %v806, %v1023
      %v1089 = vadd.f32 %v809, %v1026
      %v1090 = vadd.f32 %v812, %v1029
      %v1091 = vadd.f32 %v815, %v1032
      %v1092 = vadd.f32 %v818, %v1035
      %v1093 = vadd.f32 %v821, %v1038
      %v1094 = vadd.f32 %v824, %v1041
      %v1095 = vadd.f32 %v827, %v1044
      %v1096 = vadd.f32 %v830, %v1047
      %v1097 = vadd.f32 %v833, %v1050
      %v1098 = vadd.f32 %v836, %v1053
      %v1099 = vadd.f32 %v839, %v1056
      %v1100 = vadd.f32 %v842, %v1059
      %v1101 = vadd.f32 %v845, %v1062
      %v1102 = vadd.f32 %v848, %v1065
      %v1103 = vadd.f32 %v851, %v1068
      %v1104 = vadd.f32 %v854, %v1071
      %v1105 = vmax.f32 %v1073, 0.0
      %v1106 = vmax.f32 %v1074, 0.0
      %v1107 = vmax.f32 %v1075, 0.0
      %v1108 = vmax.f32 %v1076, 0.0
      %v1109 = vmax.f32 %v1077, 0.0
      %v1110 = vmax.f32 %v1078, 0.0
      %v1111 = vmax.f32 %v1079, 0.0
      %v1112 = vmax.f32 %v1080, 0.0
      %v1113 = vmax.f32 %v1081, 0.0
      %v1114 = vmax.f32 %v1082, 0.0
      %v1115 = vmax.f32 %v1083, 0.0
      %v1116 = vmax.f32 %v1084, 0.0
      %v1117 = vmax.f32 %v1085, 0.0
      %v1118 = vmax.f32 %v1086, 0.0
      %v1119 = vmax.f32 %v1087, 0.0
      %v1120 = vmax.f32 %v1088, 0.0
      %v1121 = vmax.f32 %v1089, 0.0
      %v1122 = vmax.f32 %v1090, 0.0
      %v1123 = vmax.f32 %v1091, 0.0
      %v1124 = vmax.f32 %v1092, 0.0
      %v1125 = vmax.f32 %v1093, 0.0
      %v1126 = vmax.f32 %v1094, 0.0
      %v1127 = vmax.f32 %v1095, 0.0
      %v1128 = vmax.f32 %v1096, 0.0
      %v1129 = vmax.f32 %v1097, 0.0
      %v1130 = vmax.f32 %v1098, 0.0
      %v1131 = vmax.f32 %v1099, 0.0
      %v1132 = vmax.f32 %v1100, 0.0
      %v1133 = vmax.f32 %v1101, 0.0
      %v1134 = vmax.f32 %v1102, 0.0
      %v1135 = vmax.f32 %v1103, 0.0
      %v1136 = vmax.f32 %v1104, 0.0
      %v1137 = vld [vmem:[%s7] sm:$0x1]
      %v1139 = vperm.slane %v1137, 0
      %v1141 = vmul.f32 %v1105, %v1139
      %v1142 = vmul.f32 %v1106, %v1139
      %v1143 = vmul.f32 %v1107, %v1139
      %v1144 = vmul.f32 %v1108, %v1139
      %v1145 = vmul.f32 %v1109, %v1139
      %v1146 = vmul.f32 %v1110, %v1139
      %v1147 = vmul.f32 %v1111, %v1139
      %v1148 = vmul.f32 %v1112, %v1139
      %v1149 = vmul.f32 %v1113, %v1139
      %v1150 = vmul.f32 %v1114, %v1139
      %v1151 = vmul.f32 %v1115, %v1139
      %v1152 = vmul.f32 %v1116, %v1139
      %v1153 = vmul.f32 %v1117, %v1139
      %v1154 = vmul.f32 %v1118, %v1139
      %v1155 = vmul.f32 %v1119, %v1139
      %v1156 = vmul.f32 %v1120, %v1139
      %v1157 = vmul.f32 %v1121, %v1139
      %v1158 = vmul.f32 %v1122, %v1139
      %v1159 = vmul.f32 %v1123, %v1139
      %v1160 = vmul.f32 %v1124, %v1139
      %v1161 = vmul.f32 %v1125, %v1139
      %v1162 = vmul.f32 %v1126, %v1139
      %v1163 = vmul.f32 %v1127, %v1139
      %v1164 = vmul.f32 %v1128, %v1139
      %v1165 = vmul.f32 %v1129, %v1139
      %v1166 = vmul.f32 %v1130, %v1139
      %v1167 = vmul.f32 %v1131, %v1139
      %v1168 = vmul.f32 %v1132, %v1139
      %v1169 = vmul.f32 %v1133, %v1139
      %v1170 = vmul.f32 %v1134, %v1139
      %v1171 = vmul.f32 %v1135, %v1139
      %v1172 = vmul.f32 %v1136, %v1139
      %v1173 = vsel %vm642, %v1141, 0.0
      %1174 = vadd.xlane.f32.xlu0 %v1173
      %v1175 = vpop.xlane.xlu0 %1174
      %v1176 = vsel %vm642, %v1142, 0.0
      %1177 = vadd.xlane.f32.xlu0 %v1176
      %v1178 = vpop.xlane.xlu0 %1177
      %v1179 = vsel %vm642, %v1143, 0.0
      %1180 = vadd.xlane.f32.xlu0 %v1179
      %v1181 = vpop.xlane.xlu0 %1180
      %v1182 = vsel %vm642, %v1144, 0.0
      %1183 = vadd.xlane.f32.xlu0 %v1182
      %v1184 = vpop.xlane.xlu0 %1183
      %v1185 = vsel %vm642, %v1145, 0.0
      %1186 = vadd.xlane.f32.xlu0 %v1185
      %v1187 = vpop.xlane.xlu0 %1186
      %v1188 = vsel %vm642, %v1146, 0.0
      %1189 = vadd.xlane.f32.xlu0 %v1188
      %v1190 = vpop.xlane.xlu0 %1189
      %v1191 = vsel %vm642, %v1147, 0.0
      %1192 = vadd.xlane.f32.xlu0 %v1191
      %v1193 = vpop.xlane.xlu0 %1192
      %v1194 = vsel %vm642, %v1148, 0.0
      %1195 = vadd.xlane.f32.xlu0 %v1194
      %v1196 = vpop.xlane.xlu0 %1195
      %v1197 = vsel %vm642, %v1149, 0.0
      %1198 = vadd.xlane.f32.xlu0 %v1197
      %v1199 = vpop.xlane.xlu0 %1198
      %v1200 = vsel %vm642, %v1150, 0.0
      %1201 = vadd.xlane.f32.xlu0 %v1200
      %v1202 = vpop.xlane.xlu0 %1201
      %v1203 = vsel %vm642, %v1151, 0.0
      %1204 = vadd.xlane.f32.xlu0 %v1203
      %v1205 = vpop.xlane.xlu0 %1204
      %v1206 = vsel %vm642, %v1152, 0.0
      %1207 = vadd.xlane.f32.xlu0 %v1206
      %v1208 = vpop.xlane.xlu0 %1207
      %v1209 = vsel %vm642, %v1153, 0.0
      %1210 = vadd.xlane.f32.xlu0 %v1209
      %v1211 = vpop.xlane.xlu0 %1210
      %v1212 = vsel %vm642, %v1154, 0.0
      %1213 = vadd.xlane.f32.xlu0 %v1212
      %v1214 = vpop.xlane.xlu0 %1213
      %v1215 = vsel %vm642, %v1155, 0.0
      %1216 = vadd.xlane.f32.xlu0 %v1215
      %v1217 = vpop.xlane.xlu0 %1216
      %v1218 = vsel %vm642, %v1156, 0.0
      %1219 = vadd.xlane.f32.xlu0 %v1218
      %v1220 = vpop.xlane.xlu0 %1219
      %v1221 = vsel %vm642, %v1157, 0.0
      %1222 = vadd.xlane.f32.xlu0 %v1221
      %v1223 = vpop.xlane.xlu0 %1222
      %v1224 = vsel %vm642, %v1158, 0.0
      %1225 = vadd.xlane.f32.xlu0 %v1224
      %v1226 = vpop.xlane.xlu0 %1225
      %v1227 = vsel %vm642, %v1159, 0.0
      %1228 = vadd.xlane.f32.xlu0 %v1227
      %v1229 = vpop.xlane.xlu0 %1228
      %v1230 = vsel %vm642, %v1160, 0.0
      %1231 = vadd.xlane.f32.xlu0 %v1230
      %v1232 = vpop.xlane.xlu0 %1231
      %v1233 = vsel %vm642, %v1161, 0.0
      %1234 = vadd.xlane.f32.xlu0 %v1233
      %v1235 = vpop.xlane.xlu0 %1234
      %v1236 = vsel %vm642, %v1162, 0.0
      %1237 = vadd.xlane.f32.xlu0 %v1236
      %v1238 = vpop.xlane.xlu0 %1237
      %v1239 = vsel %vm642, %v1163, 0.0
      %1240 = vadd.xlane.f32.xlu0 %v1239
      %v1241 = vpop.xlane.xlu0 %1240
      %v1242 = vsel %vm642, %v1164, 0.0
      %1243 = vadd.xlane.f32.xlu0 %v1242
      %v1244 = vpop.xlane.xlu0 %1243
      %v1245 = vsel %vm642, %v1165, 0.0
      %1246 = vadd.xlane.f32.xlu0 %v1245
      %v1247 = vpop.xlane.xlu0 %1246
      %v1248 = vsel %vm642, %v1166, 0.0
      %1249 = vadd.xlane.f32.xlu0 %v1248
      %v1250 = vpop.xlane.xlu0 %1249
      %v1251 = vsel %vm642, %v1167, 0.0
      %1252 = vadd.xlane.f32.xlu0 %v1251
      %v1253 = vpop.xlane.xlu0 %1252
      %v1254 = vsel %vm642, %v1168, 0.0
      %1255 = vadd.xlane.f32.xlu0 %v1254
      %v1256 = vpop.xlane.xlu0 %1255
      %v1257 = vsel %vm642, %v1169, 0.0
      %1258 = vadd.xlane.f32.xlu0 %v1257
      %v1259 = vpop.xlane.xlu0 %1258
      %v1260 = vsel %vm642, %v1170, 0.0
      %1261 = vadd.xlane.f32.xlu0 %v1260
      %v1262 = vpop.xlane.xlu0 %1261
      %v1263 = vsel %vm642, %v1171, 0.0
      %1264 = vadd.xlane.f32.xlu0 %v1263
      %v1265 = vpop.xlane.xlu0 %1264
      %v1266 = vsel %vm642, %v1172, 0.0
      %1267 = vadd.xlane.f32.xlu0 %v1266
      %v1268 = vpop.xlane.xlu0 %1267
      %v1269 = vld [vmem:[#allocation2] sm:$0x1]
      %v1271 = vperm.slane %v1269, 0
      %v1273 = vadd.f32 %v1175, %v1271
      %v1274 = vadd.f32 %v1178, %v1271
      %v1275 = vadd.f32 %v1181, %v1271
      %v1276 = vadd.f32 %v1184, %v1271
      %v1277 = vadd.f32 %v1187, %v1271
      %v1278 = vadd.f32 %v1190, %v1271
      %v1279 = vadd.f32 %v1193, %v1271
      %v1280 = vadd.f32 %v1196, %v1271
      %v1281 = vadd.f32 %v1199, %v1271
      %v1282 = vadd.f32 %v1202, %v1271
      %v1283 = vadd.f32 %v1205, %v1271
      %v1284 = vadd.f32 %v1208, %v1271
      %v1285 = vadd.f32 %v1211, %v1271
      %v1286 = vadd.f32 %v1214, %v1271
      %v1287 = vadd.f32 %v1217, %v1271
      %v1288 = vadd.f32 %v1220, %v1271
      %v1289 = vadd.f32 %v1223, %v1271
      %v1290 = vadd.f32 %v1226, %v1271
      %v1291 = vadd.f32 %v1229, %v1271
      %v1292 = vadd.f32 %v1232, %v1271
      %v1293 = vadd.f32 %v1235, %v1271
      %v1294 = vadd.f32 %v1238, %v1271
      %v1295 = vadd.f32 %v1241, %v1271
      %v1296 = vadd.f32 %v1244, %v1271
      %v1297 = vadd.f32 %v1247, %v1271
      %v1298 = vadd.f32 %v1250, %v1271
      %v1299 = vadd.f32 %v1253, %v1271
      %v1300 = vadd.f32 %v1256, %v1271
      %v1301 = vadd.f32 %v1259, %v1271
      %v1302 = vadd.f32 %v1262, %v1271
      %v1303 = vadd.f32 %v1265, %v1271
      %v1304 = vadd.f32 %v1268, %v1271
      %v1305 = vxor.u32 %v1273, 2147483648
      %v1306 = vxor.u32 %v1274, 2147483648
      %v1307 = vxor.u32 %v1275, 2147483648
      %v1308 = vxor.u32 %v1276, 2147483648
      %v1309 = vxor.u32 %v1277, 2147483648
      %v1310 = vxor.u32 %v1278, 2147483648
      %v1311 = vxor.u32 %v1279, 2147483648
      %v1312 = vxor.u32 %v1280, 2147483648
      %v1313 = vxor.u32 %v1281, 2147483648
      %v1314 = vxor.u32 %v1282, 2147483648
      %v1315 = vxor.u32 %v1283, 2147483648
      %v1316 = vxor.u32 %v1284, 2147483648
      %v1317 = vxor.u32 %v1285, 2147483648
      %v1318 = vxor.u32 %v1286, 2147483648
      %v1319 = vxor.u32 %v1287, 2147483648
      %v1320 = vxor.u32 %v1288, 2147483648
      %v1321 = vxor.u32 %v1289, 2147483648
      %v1322 = vxor.u32 %v1290, 2147483648
      %v1323 = vxor.u32 %v1291, 2147483648
      %v1324 = vxor.u32 %v1292, 2147483648
      %v1325 = vxor.u32 %v1293, 2147483648
      %v1326 = vxor.u32 %v1294, 2147483648
      %v1327 = vxor.u32 %v1295, 2147483648
      %v1328 = vxor.u32 %v1296, 2147483648
      %v1329 = vxor.u32 %v1297, 2147483648
      %v1330 = vxor.u32 %v1298, 2147483648
      %v1331 = vxor.u32 %v1299, 2147483648
      %v1332 = vxor.u32 %v1300, 2147483648
      %v1333 = vxor.u32 %v1301, 2147483648
      %v1334 = vxor.u32 %v1302, 2147483648
      %v1335 = vxor.u32 %v1303, 2147483648
      %v1336 = vxor.u32 %v1304, 2147483648
      %v1337 = vmul.f32 %v1305, 1.442695
      %v1338 = vpow.pop %v1337
      %v1339 = vmul.f32 %v1306, 1.442695
      %v1340 = vpow.pop %v1339
      %v1341 = vmul.f32 %v1307, 1.442695
      %v1342 = vpow.pop %v1341
      %v1343 = vmul.f32 %v1308, 1.442695
      %v1344 = vpow.pop %v1343
      %v1345 = vmul.f32 %v1309, 1.442695
      %v1346 = vpow.pop %v1345
      %v1347 = vmul.f32 %v1310, 1.442695
      %v1348 = vpow.pop %v1347
      %v1349 = vmul.f32 %v1311, 1.442695
      %v1350 = vpow.pop %v1349
      %v1351 = vmul.f32 %v1312, 1.442695
      %v1352 = vpow.pop %v1351
      %v1353 = vmul.f32 %v1313, 1.442695
      %v1354 = vpow.pop %v1353
      %v1355 = vmul.f32 %v1314, 1.442695
      %v1356 = vpow.pop %v1355
      %v1357 = vmul.f32 %v1315, 1.442695
      %v1358 = vpow.pop %v1357
      %v1359 = vmul.f32 %v1316, 1.442695
      %v1360 = vpow.pop %v1359
      %v1361 = vmul.f32 %v1317, 1.442695
      %v1362 = vpow.pop %v1361
      %v1363 = vmul.f32 %v1318, 1.442695
      %v1364 = vpow.pop %v1363
      %v1365 = vmul.f32 %v1319, 1.442695
      %v1366 = vpow.pop %v1365
      %v1367 = vmul.f32 %v1320, 1.442695
      %v1368 = vpow.pop %v1367
      %v1369 = vmul.f32 %v1321, 1.442695
      %v1370 = vpow.pop %v1369
      %v1371 = vmul.f32 %v1322, 1.442695
      %v1372 = vpow.pop %v1371
      %v1373 = vmul.f32 %v1323, 1.442695
      %v1374 = vpow.pop %v1373
      %v1375 = vmul.f32 %v1324, 1.442695
      %v1376 = vpow.pop %v1375
      %v1377 = vmul.f32 %v1325, 1.442695
      %v1378 = vpow.pop %v1377
      %v1379 = vmul.f32 %v1326, 1.442695
      %v1380 = vpow.pop %v1379
      %v1381 = vmul.f32 %v1327, 1.442695
      %v1382 = vpow.pop %v1381
      %v1383 = vmul.f32 %v1328, 1.442695
      %v1384 = vpow.pop %v1383
      %v1385 = vmul.f32 %v1329, 1.442695
      %v1386 = vpow.pop %v1385
      %v1387 = vmul.f32 %v1330, 1.442695
      %v1388 = vpow.pop %v1387
      %v1389 = vmul.f32 %v1331, 1.442695
      %v1390 = vpow.pop %v1389
      %v1391 = vmul.f32 %v1332, 1.442695
      %v1392 = vpow.pop %v1391
      %v1393 = vmul.f32 %v1333, 1.442695
      %v1394 = vpow.pop %v1393
      %v1395 = vmul.f32 %v1334, 1.442695
      %v1396 = vpow.pop %v1395
      %v1397 = vmul.f32 %v1335, 1.442695
      %v1398 = vpow.pop %v1397
      %v1399 = vmul.f32 %v1336, 1.442695
      %v1400 = vpow.pop %v1399
      %v1401 = vadd.f32 %v1338, 1.0
      %v1402 = vadd.f32 %v1340, 1.0
      %v1403 = vadd.f32 %v1342, 1.0
      %v1404 = vadd.f32 %v1344, 1.0
      %v1405 = vadd.f32 %v1346, 1.0
      %v1406 = vadd.f32 %v1348, 1.0
      %v1407 = vadd.f32 %v1350, 1.0
      %v1408 = vadd.f32 %v1352, 1.0
      %v1409 = vadd.f32 %v1354, 1.0
      %v1410 = vadd.f32 %v1356, 1.0
      %v1411 = vadd.f32 %v1358, 1.0
      %v1412 = vadd.f32 %v1360, 1.0
      %v1413 = vadd.f32 %v1362, 1.0
      %v1414 = vadd.f32 %v1364, 1.0
      %v1415 = vadd.f32 %v1366, 1.0
      %v1416 = vadd.f32 %v1368, 1.0
      %v1417 = vadd.f32 %v1370, 1.0
      %v1418 = vadd.f32 %v1372, 1.0
      %v1419 = vadd.f32 %v1374, 1.0
      %v1420 = vadd.f32 %v1376, 1.0
      %v1421 = vadd.f32 %v1378, 1.0
      %v1422 = vadd.f32 %v1380, 1.0
      %v1423 = vadd.f32 %v1382, 1.0
      %v1424 = vadd.f32 %v1384, 1.0
      %v1425 = vadd.f32 %v1386, 1.0
      %v1426 = vadd.f32 %v1388, 1.0
      %v1427 = vadd.f32 %v1390, 1.0
      %v1428 = vadd.f32 %v1392, 1.0
      %v1429 = vadd.f32 %v1394, 1.0
      %v1430 = vadd.f32 %v1396, 1.0
      %v1431 = vadd.f32 %v1398, 1.0
      %v1432 = vadd.f32 %v1400, 1.0
      %v1433 = vrcp.pop %v1401
      %v1434 = vmul.f32 %v1401, %v1433
      %v1435 = vsub.f32 1.0, %v1434
      %v1436 = vmul.f32 %v1433, %v1435
      %v1437 = vadd.f32 %v1433, %v1436
      %vm1438 = vweird.f32 %v1401
      %vm1439 = vweird.f32 %v1433
      %vm1440 = vmor %vm1438, %vm1439
      %v1441 = vsel %vm1440, %v1433, %v1437
      %v1442 = vand.u32 2147483647, %v1401
      %vm1443 = vcmp.eq.f32.partialorder %v1442, 8.507059e+37
      %v1444 = vand.u32 %v1401, 2147483648
      %v1445 = vor.u32 1.1754944e-38, %v1444
      %v1446 = vsel %vm1443, %v1445, %v1441
      %v1447 = vmul.f32 1.0, %v1446
      %v1448 = vrcp.pop %v1402
      %v1449 = vmul.f32 %v1402, %v1448
      %v1450 = vsub.f32 1.0, %v1449
      %v1451 = vmul.f32 %v1448, %v1450
      %v1452 = vadd.f32 %v1448, %v1451
      %vm1453 = vweird.f32 %v1402
      %vm1454 = vweird.f32 %v1448
      %vm1455 = vmor %vm1453, %vm1454
      %v1456 = vsel %vm1455, %v1448, %v1452
      %v1457 = vand.u32 2147483647, %v1402
      %vm1458 = vcmp.eq.f32.partialorder %v1457, 8.507059e+37
      %v1459 = vand.u32 %v1402, 2147483648
      %v1460 = vor.u32 1.1754944e-38, %v1459
      %v1461 = vsel %vm1458, %v1460, %v1456
      %v1462 = vmul.f32 1.0, %v1461
      %v1463 = vrcp.pop %v1403
      %v1464 = vmul.f32 %v1403, %v1463
      %v1465 = vsub.f32 1.0, %v1464
      %v1466 = vmul.f32 %v1463, %v1465
      %v1467 = vadd.f32 %v1463, %v1466
      %vm1468 = vweird.f32 %v1403
      %vm1469 = vweird.f32 %v1463
      %vm1470 = vmor %vm1468, %vm1469
      %v1471 = vsel %vm1470, %v1463, %v1467
      %v1472 = vand.u32 2147483647, %v1403
      %vm1473 = vcmp.eq.f32.partialorder %v1472, 8.507059e+37
      %v1474 = vand.u32 %v1403, 2147483648
      %v1475 = vor.u32 1.1754944e-38, %v1474
      %v1476 = vsel %vm1473, %v1475, %v1471
      %v1477 = vmul.f32 1.0, %v1476
      %v1478 = vrcp.pop %v1404
      %v1479 = vmul.f32 %v1404, %v1478
      %v1480 = vsub.f32 1.0, %v1479
      %v1481 = vmul.f32 %v1478, %v1480
      %v1482 = vadd.f32 %v1478, %v1481
      %vm1483 = vweird.f32 %v1404
      %vm1484 = vweird.f32 %v1478
      %vm1485 = vmor %vm1483, %vm1484
      %v1486 = vsel %vm1485, %v1478, %v1482
      %v1487 = vand.u32 2147483647, %v1404
      %vm1488 = vcmp.eq.f32.partialorder %v1487, 8.507059e+37
      %v1489 = vand.u32 %v1404, 2147483648
      %v1490 = vor.u32 1.1754944e-38, %v1489
      %v1491 = vsel %vm1488, %v1490, %v1486
      %v1492 = vmul.f32 1.0, %v1491
      %v1493 = vrcp.pop %v1405
      %v1494 = vmul.f32 %v1405, %v1493
      %v1495 = vsub.f32 1.0, %v1494
      %v1496 = vmul.f32 %v1493, %v1495
      %v1497 = vadd.f32 %v1493, %v1496
      %vm1498 = vweird.f32 %v1405
      %vm1499 = vweird.f32 %v1493
      %vm1500 = vmor %vm1498, %vm1499
      %v1501 = vsel %vm1500, %v1493, %v1497
      %v1502 = vand.u32 2147483647, %v1405
      %vm1503 = vcmp.eq.f32.partialorder %v1502, 8.507059e+37
      %v1504 = vand.u32 %v1405, 2147483648
      %v1505 = vor.u32 1.1754944e-38, %v1504
      %v1506 = vsel %vm1503, %v1505, %v1501
      %v1507 = vmul.f32 1.0, %v1506
      %v1508 = vrcp.pop %v1406
      %v1509 = vmul.f32 %v1406, %v1508
      %v1510 = vsub.f32 1.0, %v1509
      %v1511 = vmul.f32 %v1508, %v1510
      %v1512 = vadd.f32 %v1508, %v1511
      %vm1513 = vweird.f32 %v1406
      %vm1514 = vweird.f32 %v1508
      %vm1515 = vmor %vm1513, %vm1514
      %v1516 = vsel %vm1515, %v1508, %v1512
      %v1517 = vand.u32 2147483647, %v1406
      %vm1518 = vcmp.eq.f32.partialorder %v1517, 8.507059e+37
      %v1519 = vand.u32 %v1406, 2147483648
      %v1520 = vor.u32 1.1754944e-38, %v1519
      %v1521 = vsel %vm1518, %v1520, %v1516
      %v1522 = vmul.f32 1.0, %v1521
      %v1523 = vrcp.pop %v1407
      %v1524 = vmul.f32 %v1407, %v1523
      %v1525 = vsub.f32 1.0, %v1524
      %v1526 = vmul.f32 %v1523, %v1525
      %v1527 = vadd.f32 %v1523, %v1526
      %vm1528 = vweird.f32 %v1407
      %vm1529 = vweird.f32 %v1523
      %vm1530 = vmor %vm1528, %vm1529
      %v1531 = vsel %vm1530, %v1523, %v1527
      %v1532 = vand.u32 2147483647, %v1407
      %vm1533 = vcmp.eq.f32.partialorder %v1532, 8.507059e+37
      %v1534 = vand.u32 %v1407, 2147483648
      %v1535 = vor.u32 1.1754944e-38, %v1534
      %v1536 = vsel %vm1533, %v1535, %v1531
      %v1537 = vmul.f32 1.0, %v1536
      %v1538 = vrcp.pop %v1408
      %v1539 = vmul.f32 %v1408, %v1538
      %v1540 = vsub.f32 1.0, %v1539
      %v1541 = vmul.f32 %v1538, %v1540
      %v1542 = vadd.f32 %v1538, %v1541
      %vm1543 = vweird.f32 %v1408
      %vm1544 = vweird.f32 %v1538
      %vm1545 = vmor %vm1543, %vm1544
      %v1546 = vsel %vm1545, %v1538, %v1542
      %v1547 = vand.u32 2147483647, %v1408
      %vm1548 = vcmp.eq.f32.partialorder %v1547, 8.507059e+37
      %v1549 = vand.u32 %v1408, 2147483648
      %v1550 = vor.u32 1.1754944e-38, %v1549
      %v1551 = vsel %vm1548, %v1550, %v1546
      %v1552 = vmul.f32 1.0, %v1551
      %v1553 = vrcp.pop %v1409
      %v1554 = vmul.f32 %v1409, %v1553
      %v1555 = vsub.f32 1.0, %v1554
      %v1556 = vmul.f32 %v1553, %v1555
      %v1557 = vadd.f32 %v1553, %v1556
      %vm1558 = vweird.f32 %v1409
      %vm1559 = vweird.f32 %v1553
      %vm1560 = vmor %vm1558, %vm1559
      %v1561 = vsel %vm1560, %v1553, %v1557
      %v1562 = vand.u32 2147483647, %v1409
      %vm1563 = vcmp.eq.f32.partialorder %v1562, 8.507059e+37
      %v1564 = vand.u32 %v1409, 2147483648
      %v1565 = vor.u32 1.1754944e-38, %v1564
      %v1566 = vsel %vm1563, %v1565, %v1561
      %v1567 = vmul.f32 1.0, %v1566
      %v1568 = vrcp.pop %v1410
      %v1569 = vmul.f32 %v1410, %v1568
      %v1570 = vsub.f32 1.0, %v1569
      %v1571 = vmul.f32 %v1568, %v1570
      %v1572 = vadd.f32 %v1568, %v1571
      %vm1573 = vweird.f32 %v1410
      %vm1574 = vweird.f32 %v1568
      %vm1575 = vmor %vm1573, %vm1574
      %v1576 = vsel %vm1575, %v1568, %v1572
      %v1577 = vand.u32 2147483647, %v1410
      %vm1578 = vcmp.eq.f32.partialorder %v1577, 8.507059e+37
      %v1579 = vand.u32 %v1410, 2147483648
      %v1580 = vor.u32 1.1754944e-38, %v1579
      %v1581 = vsel %vm1578, %v1580, %v1576
      %v1582 = vmul.f32 1.0, %v1581
      %v1583 = vrcp.pop %v1411
      %v1584 = vmul.f32 %v1411, %v1583
      %v1585 = vsub.f32 1.0, %v1584
      %v1586 = vmul.f32 %v1583, %v1585
      %v1587 = vadd.f32 %v1583, %v1586
      %vm1588 = vweird.f32 %v1411
      %vm1589 = vweird.f32 %v1583
      %vm1590 = vmor %vm1588, %vm1589
      %v1591 = vsel %vm1590, %v1583, %v1587
      %v1592 = vand.u32 2147483647, %v1411
      %vm1593 = vcmp.eq.f32.partialorder %v1592, 8.507059e+37
      %v1594 = vand.u32 %v1411, 2147483648
      %v1595 = vor.u32 1.1754944e-38, %v1594
      %v1596 = vsel %vm1593, %v1595, %v1591
      %v1597 = vmul.f32 1.0, %v1596
      %v1598 = vrcp.pop %v1412
      %v1599 = vmul.f32 %v1412, %v1598
      %v1600 = vsub.f32 1.0, %v1599
      %v1601 = vmul.f32 %v1598, %v1600
      %v1602 = vadd.f32 %v1598, %v1601
      %vm1603 = vweird.f32 %v1412
      %vm1604 = vweird.f32 %v1598
      %vm1605 = vmor %vm1603, %vm1604
      %v1606 = vsel %vm1605, %v1598, %v1602
      %v1607 = vand.u32 2147483647, %v1412
      %vm1608 = vcmp.eq.f32.partialorder %v1607, 8.507059e+37
      %v1609 = vand.u32 %v1412, 2147483648
      %v1610 = vor.u32 1.1754944e-38, %v1609
      %v1611 = vsel %vm1608, %v1610, %v1606
      %v1612 = vmul.f32 1.0, %v1611
      %v1613 = vrcp.pop %v1413
      %v1614 = vmul.f32 %v1413, %v1613
      %v1615 = vsub.f32 1.0, %v1614
      %v1616 = vmul.f32 %v1613, %v1615
      %v1617 = vadd.f32 %v1613, %v1616
      %vm1618 = vweird.f32 %v1413
      %vm1619 = vweird.f32 %v1613
      %vm1620 = vmor %vm1618, %vm1619
      %v1621 = vsel %vm1620, %v1613, %v1617
      %v1622 = vand.u32 2147483647, %v1413
      %vm1623 = vcmp.eq.f32.partialorder %v1622, 8.507059e+37
      %v1624 = vand.u32 %v1413, 2147483648
      %v1625 = vor.u32 1.1754944e-38, %v1624
      %v1626 = vsel %vm1623, %v1625, %v1621
      %v1627 = vmul.f32 1.0, %v1626
      %v1628 = vrcp.pop %v1414
      %v1629 = vmul.f32 %v1414, %v1628
      %v1630 = vsub.f32 1.0, %v1629
      %v1631 = vmul.f32 %v1628, %v1630
      %v1632 = vadd.f32 %v1628, %v1631
      %vm1633 = vweird.f32 %v1414
      %vm1634 = vweird.f32 %v1628
      %vm1635 = vmor %vm1633, %vm1634
      %v1636 = vsel %vm1635, %v1628, %v1632
      %v1637 = vand.u32 2147483647, %v1414
      %vm1638 = vcmp.eq.f32.partialorder %v1637, 8.507059e+37
      %v1639 = vand.u32 %v1414, 2147483648
      %v1640 = vor.u32 1.1754944e-38, %v1639
      %v1641 = vsel %vm1638, %v1640, %v1636
      %v1642 = vmul.f32 1.0, %v1641
      %v1643 = vrcp.pop %v1415
      %v1644 = vmul.f32 %v1415, %v1643
      %v1645 = vsub.f32 1.0, %v1644
      %v1646 = vmul.f32 %v1643, %v1645
      %v1647 = vadd.f32 %v1643, %v1646
      %vm1648 = vweird.f32 %v1415
      %vm1649 = vweird.f32 %v1643
      %vm1650 = vmor %vm1648, %vm1649
      %v1651 = vsel %vm1650, %v1643, %v1647
      %v1652 = vand.u32 2147483647, %v1415
      %vm1653 = vcmp.eq.f32.partialorder %v1652, 8.507059e+37
      %v1654 = vand.u32 %v1415, 2147483648
      %v1655 = vor.u32 1.1754944e-38, %v1654
      %v1656 = vsel %vm1653, %v1655, %v1651
      %v1657 = vmul.f32 1.0, %v1656
      %v1658 = vrcp.pop %v1416
      %v1659 = vmul.f32 %v1416, %v1658
      %v1660 = vsub.f32 1.0, %v1659
      %v1661 = vmul.f32 %v1658, %v1660
      %v1662 = vadd.f32 %v1658, %v1661
      %vm1663 = vweird.f32 %v1416
      %vm1664 = vweird.f32 %v1658
      %vm1665 = vmor %vm1663, %vm1664
      %v1666 = vsel %vm1665, %v1658, %v1662
      %v1667 = vand.u32 2147483647, %v1416
      %vm1668 = vcmp.eq.f32.partialorder %v1667, 8.507059e+37
      %v1669 = vand.u32 %v1416, 2147483648
      %v1670 = vor.u32 1.1754944e-38, %v1669
      %v1671 = vsel %vm1668, %v1670, %v1666
      %v1672 = vmul.f32 1.0, %v1671
      %v1673 = vrcp.pop %v1417
      %v1674 = vmul.f32 %v1417, %v1673
      %v1675 = vsub.f32 1.0, %v1674
      %v1676 = vmul.f32 %v1673, %v1675
      %v1677 = vadd.f32 %v1673, %v1676
      %vm1678 = vweird.f32 %v1417
      %vm1679 = vweird.f32 %v1673
      %vm1680 = vmor %vm1678, %vm1679
      %v1681 = vsel %vm1680, %v1673, %v1677
      %v1682 = vand.u32 2147483647, %v1417
      %vm1683 = vcmp.eq.f32.partialorder %v1682, 8.507059e+37
      %v1684 = vand.u32 %v1417, 2147483648
      %v1685 = vor.u32 1.1754944e-38, %v1684
      %v1686 = vsel %vm1683, %v1685, %v1681
      %v1687 = vmul.f32 1.0, %v1686
      %v1688 = vrcp.pop %v1418
      %v1689 = vmul.f32 %v1418, %v1688
      %v1690 = vsub.f32 1.0, %v1689
      %v1691 = vmul.f32 %v1688, %v1690
      %v1692 = vadd.f32 %v1688, %v1691
      %vm1693 = vweird.f32 %v1418
      %vm1694 = vweird.f32 %v1688
      %vm1695 = vmor %vm1693, %vm1694
      %v1696 = vsel %vm1695, %v1688, %v1692
      %v1697 = vand.u32 2147483647, %v1418
      %vm1698 = vcmp.eq.f32.partialorder %v1697, 8.507059e+37
      %v1699 = vand.u32 %v1418, 2147483648
      %v1700 = vor.u32 1.1754944e-38, %v1699
      %v1701 = vsel %vm1698, %v1700, %v1696
      %v1702 = vmul.f32 1.0, %v1701
      %v1703 = vrcp.pop %v1419
      %v1704 = vmul.f32 %v1419, %v1703
      %v1705 = vsub.f32 1.0, %v1704
      %v1706 = vmul.f32 %v1703, %v1705
      %v1707 = vadd.f32 %v1703, %v1706
      %vm1708 = vweird.f32 %v1419
      %vm1709 = vweird.f32 %v1703
      %vm1710 = vmor %vm1708, %vm1709
      %v1711 = vsel %vm1710, %v1703, %v1707
      %v1712 = vand.u32 2147483647, %v1419
      %vm1713 = vcmp.eq.f32.partialorder %v1712, 8.507059e+37
      %v1714 = vand.u32 %v1419, 2147483648
      %v1715 = vor.u32 1.1754944e-38, %v1714
      %v1716 = vsel %vm1713, %v1715, %v1711
      %v1717 = vmul.f32 1.0, %v1716
      %v1718 = vrcp.pop %v1420
      %v1719 = vmul.f32 %v1420, %v1718
      %v1720 = vsub.f32 1.0, %v1719
      %v1721 = vmul.f32 %v1718, %v1720
      %v1722 = vadd.f32 %v1718, %v1721
      %vm1723 = vweird.f32 %v1420
      %vm1724 = vweird.f32 %v1718
      %vm1725 = vmor %vm1723, %vm1724
      %v1726 = vsel %vm1725, %v1718, %v1722
      %v1727 = vand.u32 2147483647, %v1420
      %vm1728 = vcmp.eq.f32.partialorder %v1727, 8.507059e+37
      %v1729 = vand.u32 %v1420, 2147483648
      %v1730 = vor.u32 1.1754944e-38, %v1729
      %v1731 = vsel %vm1728, %v1730, %v1726
      %v1732 = vmul.f32 1.0, %v1731
      %v1733 = vrcp.pop %v1421
      %v1734 = vmul.f32 %v1421, %v1733
      %v1735 = vsub.f32 1.0, %v1734
      %v1736 = vmul.f32 %v1733, %v1735
      %v1737 = vadd.f32 %v1733, %v1736
      %vm1738 = vweird.f32 %v1421
      %vm1739 = vweird.f32 %v1733
      %vm1740 = vmor %vm1738, %vm1739
      %v1741 = vsel %vm1740, %v1733, %v1737
      %v1742 = vand.u32 2147483647, %v1421
      %vm1743 = vcmp.eq.f32.partialorder %v1742, 8.507059e+37
      %v1744 = vand.u32 %v1421, 2147483648
      %v1745 = vor.u32 1.1754944e-38, %v1744
      %v1746 = vsel %vm1743, %v1745, %v1741
      %v1747 = vmul.f32 1.0, %v1746
      %v1748 = vrcp.pop %v1422
      %v1749 = vmul.f32 %v1422, %v1748
      %v1750 = vsub.f32 1.0, %v1749
      %v1751 = vmul.f32 %v1748, %v1750
      %v1752 = vadd.f32 %v1748, %v1751
      %vm1753 = vweird.f32 %v1422
      %vm1754 = vweird.f32 %v1748
      %vm1755 = vmor %vm1753, %vm1754
      %v1756 = vsel %vm1755, %v1748, %v1752
      %v1757 = vand.u32 2147483647, %v1422
      %vm1758 = vcmp.eq.f32.partialorder %v1757, 8.507059e+37
      %v1759 = vand.u32 %v1422, 2147483648
      %v1760 = vor.u32 1.1754944e-38, %v1759
      %v1761 = vsel %vm1758, %v1760, %v1756
      %v1762 = vmul.f32 1.0, %v1761
      %v1763 = vrcp.pop %v1423
      %v1764 = vmul.f32 %v1423, %v1763
      %v1765 = vsub.f32 1.0, %v1764
      %v1766 = vmul.f32 %v1763, %v1765
      %v1767 = vadd.f32 %v1763, %v1766
      %vm1768 = vweird.f32 %v1423
      %vm1769 = vweird.f32 %v1763
      %vm1770 = vmor %vm1768, %vm1769
      %v1771 = vsel %vm1770, %v1763, %v1767
      %v1772 = vand.u32 2147483647, %v1423
      %vm1773 = vcmp.eq.f32.partialorder %v1772, 8.507059e+37
      %v1774 = vand.u32 %v1423, 2147483648
      %v1775 = vor.u32 1.1754944e-38, %v1774
      %v1776 = vsel %vm1773, %v1775, %v1771
      %v1777 = vmul.f32 1.0, %v1776
      %v1778 = vrcp.pop %v1424
      %v1779 = vmul.f32 %v1424, %v1778
      %v1780 = vsub.f32 1.0, %v1779
      %v1781 = vmul.f32 %v1778, %v1780
      %v1782 = vadd.f32 %v1778, %v1781
      %vm1783 = vweird.f32 %v1424
      %vm1784 = vweird.f32 %v1778
      %vm1785 = vmor %vm1783, %vm1784
      %v1786 = vsel %vm1785, %v1778, %v1782
      %v1787 = vand.u32 2147483647, %v1424
      %vm1788 = vcmp.eq.f32.partialorder %v1787, 8.507059e+37
      %v1789 = vand.u32 %v1424, 2147483648
      %v1790 = vor.u32 1.1754944e-38, %v1789
      %v1791 = vsel %vm1788, %v1790, %v1786
      %v1792 = vmul.f32 1.0, %v1791
      %v1793 = vrcp.pop %v1425
      %v1794 = vmul.f32 %v1425, %v1793
      %v1795 = vsub.f32 1.0, %v1794
      %v1796 = vmul.f32 %v1793, %v1795
      %v1797 = vadd.f32 %v1793, %v1796
      %vm1798 = vweird.f32 %v1425
      %vm1799 = vweird.f32 %v1793
      %vm1800 = vmor %vm1798, %vm1799
      %v1801 = vsel %vm1800, %v1793, %v1797
      %v1802 = vand.u32 2147483647, %v1425
      %vm1803 = vcmp.eq.f32.partialorder %v1802, 8.507059e+37
      %v1804 = vand.u32 %v1425, 2147483648
      %v1805 = vor.u32 1.1754944e-38, %v1804
      %v1806 = vsel %vm1803, %v1805, %v1801
      %v1807 = vmul.f32 1.0, %v1806
      %v1808 = vrcp.pop %v1426
      %v1809 = vmul.f32 %v1426, %v1808
      %v1810 = vsub.f32 1.0, %v1809
      %v1811 = vmul.f32 %v1808, %v1810
      %v1812 = vadd.f32 %v1808, %v1811
      %vm1813 = vweird.f32 %v1426
      %vm1814 = vweird.f32 %v1808
      %vm1815 = vmor %vm1813, %vm1814
      %v1816 = vsel %vm1815, %v1808, %v1812
      %v1817 = vand.u32 2147483647, %v1426
      %vm1818 = vcmp.eq.f32.partialorder %v1817, 8.507059e+37
      %v1819 = vand.u32 %v1426, 2147483648
      %v1820 = vor.u32 1.1754944e-38, %v1819
      %v1821 = vsel %vm1818, %v1820, %v1816
      %v1822 = vmul.f32 1.0, %v1821
      %v1823 = vrcp.pop %v1427
      %v1824 = vmul.f32 %v1427, %v1823
      %v1825 = vsub.f32 1.0, %v1824
      %v1826 = vmul.f32 %v1823, %v1825
      %v1827 = vadd.f32 %v1823, %v1826
      %vm1828 = vweird.f32 %v1427
      %vm1829 = vweird.f32 %v1823
      %vm1830 = vmor %vm1828, %vm1829
      %v1831 = vsel %vm1830, %v1823, %v1827
      %v1832 = vand.u32 2147483647, %v1427
      %vm1833 = vcmp.eq.f32.partialorder %v1832, 8.507059e+37
      %v1834 = vand.u32 %v1427, 2147483648
      %v1835 = vor.u32 1.1754944e-38, %v1834
      %v1836 = vsel %vm1833, %v1835, %v1831
      %v1837 = vmul.f32 1.0, %v1836
      %v1838 = vrcp.pop %v1428
      %v1839 = vmul.f32 %v1428, %v1838
      %v1840 = vsub.f32 1.0, %v1839
      %v1841 = vmul.f32 %v1838, %v1840
      %v1842 = vadd.f32 %v1838, %v1841
      %vm1843 = vweird.f32 %v1428
      %vm1844 = vweird.f32 %v1838
      %vm1845 = vmor %vm1843, %vm1844
      %v1846 = vsel %vm1845, %v1838, %v1842
      %v1847 = vand.u32 2147483647, %v1428
      %vm1848 = vcmp.eq.f32.partialorder %v1847, 8.507059e+37
      %v1849 = vand.u32 %v1428, 2147483648
      %v1850 = vor.u32 1.1754944e-38, %v1849
      %v1851 = vsel %vm1848, %v1850, %v1846
      %v1852 = vmul.f32 1.0, %v1851
      %v1853 = vrcp.pop %v1429
      %v1854 = vmul.f32 %v1429, %v1853
      %v1855 = vsub.f32 1.0, %v1854
      %v1856 = vmul.f32 %v1853, %v1855
      %v1857 = vadd.f32 %v1853, %v1856
      %vm1858 = vweird.f32 %v1429
      %vm1859 = vweird.f32 %v1853
      %vm1860 = vmor %vm1858, %vm1859
      %v1861 = vsel %vm1860, %v1853, %v1857
      %v1862 = vand.u32 2147483647, %v1429
      %vm1863 = vcmp.eq.f32.partialorder %v1862, 8.507059e+37
      %v1864 = vand.u32 %v1429, 2147483648
      %v1865 = vor.u32 1.1754944e-38, %v1864
      %v1866 = vsel %vm1863, %v1865, %v1861
      %v1867 = vmul.f32 1.0, %v1866
      %v1868 = vrcp.pop %v1430
      %v1869 = vmul.f32 %v1430, %v1868
      %v1870 = vsub.f32 1.0, %v1869
      %v1871 = vmul.f32 %v1868, %v1870
      %v1872 = vadd.f32 %v1868, %v1871
      %vm1873 = vweird.f32 %v1430
      %vm1874 = vweird.f32 %v1868
      %vm1875 = vmor %vm1873, %vm1874
      %v1876 = vsel %vm1875, %v1868, %v1872
      %v1877 = vand.u32 2147483647, %v1430
      %vm1878 = vcmp.eq.f32.partialorder %v1877, 8.507059e+37
      %v1879 = vand.u32 %v1430, 2147483648
      %v1880 = vor.u32 1.1754944e-38, %v1879
      %v1881 = vsel %vm1878, %v1880, %v1876
      %v1882 = vmul.f32 1.0, %v1881
      %v1883 = vrcp.pop %v1431
      %v1884 = vmul.f32 %v1431, %v1883
      %v1885 = vsub.f32 1.0, %v1884
      %v1886 = vmul.f32 %v1883, %v1885
      %v1887 = vadd.f32 %v1883, %v1886
      %vm1888 = vweird.f32 %v1431
      %vm1889 = vweird.f32 %v1883
      %vm1890 = vmor %vm1888, %vm1889
      %v1891 = vsel %vm1890, %v1883, %v1887
      %v1892 = vand.u32 2147483647, %v1431
      %vm1893 = vcmp.eq.f32.partialorder %v1892, 8.507059e+37
      %v1894 = vand.u32 %v1431, 2147483648
      %v1895 = vor.u32 1.1754944e-38, %v1894
      %v1896 = vsel %vm1893, %v1895, %v1891
      %v1897 = vmul.f32 1.0, %v1896
      %v1898 = vrcp.pop %v1432
      %v1899 = vmul.f32 %v1432, %v1898
      %v1900 = vsub.f32 1.0, %v1899
      %v1901 = vmul.f32 %v1898, %v1900
      %v1902 = vadd.f32 %v1898, %v1901
      %vm1903 = vweird.f32 %v1432
      %vm1904 = vweird.f32 %v1898
      %vm1905 = vmor %vm1903, %vm1904
      %v1906 = vsel %vm1905, %v1898, %v1902
      %v1907 = vand.u32 2147483647, %v1432
      %vm1908 = vcmp.eq.f32.partialorder %v1907, 8.507059e+37
      %v1909 = vand.u32 %v1432, 2147483648
      %v1910 = vor.u32 1.1754944e-38, %v1909
      %v1911 = vsel %vm1908, %v1910, %v1906
      %v1912 = vmul.f32 1.0, %v1911
      %1914 = vset.pattern.permute.xlu0 0
      %1915 = vperm.xlu0 %1914, %v1447
      %v1916 = vpop.permute.xlu0 %1915
      %1919 = vset.pattern.permute.xlu0 0
      %1920 = vperm.xlu0 %1919, %v1462
      %v1921 = vpop.permute.xlu0 %1920
      %1924 = vset.pattern.permute.xlu0 0
      %1925 = vperm.xlu0 %1924, %v1477
      %v1926 = vpop.permute.xlu0 %1925
      %1929 = vset.pattern.permute.xlu0 0
      %1930 = vperm.xlu0 %1929, %v1492
      %v1931 = vpop.permute.xlu0 %1930
      %1934 = vset.pattern.permute.xlu0 0
      %1935 = vperm.xlu0 %1934, %v1507
      %v1936 = vpop.permute.xlu0 %1935
      %1939 = vset.pattern.permute.xlu0 0
      %1940 = vperm.xlu0 %1939, %v1522
      %v1941 = vpop.permute.xlu0 %1940
      %1944 = vset.pattern.permute.xlu0 0
      %1945 = vperm.xlu0 %1944, %v1537
      %v1946 = vpop.permute.xlu0 %1945
      %1949 = vset.pattern.permute.xlu0 0
      %1950 = vperm.xlu0 %1949, %v1552
      %v1951 = vpop.permute.xlu0 %1950
      %1954 = vset.pattern.permute.xlu0 0
      %1955 = vperm.xlu0 %1954, %v1567
      %v1956 = vpop.permute.xlu0 %1955
      %1959 = vset.pattern.permute.xlu0 0
      %1960 = vperm.xlu0 %1959, %v1582
      %v1961 = vpop.permute.xlu0 %1960
      %1964 = vset.pattern.permute.xlu0 0
      %1965 = vperm.xlu0 %1964, %v1597
      %v1966 = vpop.permute.xlu0 %1965
      %1969 = vset.pattern.permute.xlu0 0
      %1970 = vperm.xlu0 %1969, %v1612
      %v1971 = vpop.permute.xlu0 %1970
      %1974 = vset.pattern.permute.xlu0 0
      %1975 = vperm.xlu0 %1974, %v1627
      %v1976 = vpop.permute.xlu0 %1975
      %1979 = vset.pattern.permute.xlu0 0
      %1980 = vperm.xlu0 %1979, %v1642
      %v1981 = vpop.permute.xlu0 %1980
      %1984 = vset.pattern.permute.xlu0 0
      %1985 = vperm.xlu0 %1984, %v1657
      %v1986 = vpop.permute.xlu0 %1985
      %1989 = vset.pattern.permute.xlu0 0
      %1990 = vperm.xlu0 %1989, %v1672
      %v1991 = vpop.permute.xlu0 %1990
      %1994 = vset.pattern.permute.xlu0 0
      %1995 = vperm.xlu0 %1994, %v1687
      %v1996 = vpop.permute.xlu0 %1995
      %1999 = vset.pattern.permute.xlu0 0
      %2000 = vperm.xlu0 %1999, %v1702
      %v2001 = vpop.permute.xlu0 %2000
      %2004 = vset.pattern.permute.xlu0 0
      %2005 = vperm.xlu0 %2004, %v1717
      %v2006 = vpop.permute.xlu0 %2005
      %2009 = vset.pattern.permute.xlu0 0
      %2010 = vperm.xlu0 %2009, %v1732
      %v2011 = vpop.permute.xlu0 %2010
      %2014 = vset.pattern.permute.xlu0 0
      %2015 = vperm.xlu0 %2014, %v1747
      %v2016 = vpop.permute.xlu0 %2015
      %2019 = vset.pattern.permute.xlu0 0
      %2020 = vperm.xlu0 %2019, %v1762
      %v2021 = vpop.permute.xlu0 %2020
      %2024 = vset.pattern.permute.xlu0 0
      %2025 = vperm.xlu0 %2024, %v1777
      %v2026 = vpop.permute.xlu0 %2025
      %2029 = vset.pattern.permute.xlu0 0
      %2030 = vperm.xlu0 %2029, %v1792
      %v2031 = vpop.permute.xlu0 %2030
      %2034 = vset.pattern.permute.xlu0 0
      %2035 = vperm.xlu0 %2034, %v1807
      %v2036 = vpop.permute.xlu0 %2035
      %2039 = vset.pattern.permute.xlu0 0
      %2040 = vperm.xlu0 %2039, %v1822
      %v2041 = vpop.permute.xlu0 %2040
      %2044 = vset.pattern.permute.xlu0 0
      %2045 = vperm.xlu0 %2044, %v1837
      %v2046 = vpop.permute.xlu0 %2045
      %2049 = vset.pattern.permute.xlu0 0
      %2050 = vperm.xlu0 %2049, %v1852
      %v2051 = vpop.permute.xlu0 %2050
      %2054 = vset.pattern.permute.xlu0 0
      %2055 = vperm.xlu0 %2054, %v1867
      %v2056 = vpop.permute.xlu0 %2055
      %2059 = vset.pattern.permute.xlu0 0
      %2060 = vperm.xlu0 %2059, %v1882
      %v2061 = vpop.permute.xlu0 %2060
      %2064 = vset.pattern.permute.xlu0 0
      %2065 = vperm.xlu0 %2064, %v1897
      %v2066 = vpop.permute.xlu0 %2065
      %2069 = vset.pattern.permute.xlu0 0
      %2070 = vperm.xlu0 %2069, %v1912
      %v2071 = vpop.permute.xlu0 %2070
      %v2073 = vmul.f32 %v363, %v1916
      %v2074 = vmul.f32 %v364, %v1921
      %v2075 = vmul.f32 %v365, %v1926
      %v2076 = vmul.f32 %v366, %v1931
      %v2077 = vmul.f32 %v367, %v1936
      %v2078 = vmul.f32 %v368, %v1941
      %v2079 = vmul.f32 %v369, %v1946
      %v2080 = vmul.f32 %v370, %v1951
      %v2081 = vmul.f32 %v371, %v1956
      %v2082 = vmul.f32 %v372, %v1961
      %v2083 = vmul.f32 %v373, %v1966
      %v2084 = vmul.f32 %v374, %v1971
      %v2085 = vmul.f32 %v375, %v1976
      %v2086 = vmul.f32 %v376, %v1981
      %v2087 = vmul.f32 %v377, %v1986
      %v2088 = vmul.f32 %v378, %v1991
      %v2089 = vmul.f32 %v379, %v1996
      %v2090 = vmul.f32 %v380, %v2001
      %v2091 = vmul.f32 %v381, %v2006
      %v2092 = vmul.f32 %v382, %v2011
      %v2093 = vmul.f32 %v383, %v2016
      %v2094 = vmul.f32 %v384, %v2021
      %v2095 = vmul.f32 %v385, %v2026
      %v2096 = vmul.f32 %v386, %v2031
      %v2097 = vmul.f32 %v387, %v2036
      %v2098 = vmul.f32 %v388, %v2041
      %v2099 = vmul.f32 %v389, %v2046
      %v2100 = vmul.f32 %v390, %v2051
      %v2101 = vmul.f32 %v391, %v2056
      %v2102 = vmul.f32 %v392, %v2061
      %v2103 = vmul.f32 %v393, %v2066
      %v2104 = vmul.f32 %v394, %v2071
      %2105 = vrot.lane.b32.xlu0 %v542, 4
      %v2106 = vpop.permute.xlu0 %2105
      %2107 = vrot.lane.b32.xlu0 %v545, 4
      %v2108 = vpop.permute.xlu0 %2107
      %2109 = vrot.lane.b32.xlu0 %v548, 4
      %v2110 = vpop.permute.xlu0 %2109
      %2111 = vrot.lane.b32.xlu0 %v551, 4
      %v2112 = vpop.permute.xlu0 %2111
      %2113 = vrot.lane.b32.xlu0 %v554, 4
      %v2114 = vpop.permute.xlu0 %2113
      %2115 = vrot.lane.b32.xlu0 %v557, 4
      %v2116 = vpop.permute.xlu0 %2115
      %2117 = vrot.lane.b32.xlu0 %v560, 4
      %v2118 = vpop.permute.xlu0 %2117
      %2119 = vrot.lane.b32.xlu0 %v563, 4
      %v2120 = vpop.permute.xlu0 %2119
      %2121 = vrot.lane.b32.xlu0 %v566, 4
      %v2122 = vpop.permute.xlu0 %2121
      %2123 = vrot.lane.b32.xlu0 %v569, 4
      %v2124 = vpop.permute.xlu0 %2123
      %2125 = vrot.lane.b32.xlu0 %v572, 4
      %v2126 = vpop.permute.xlu0 %2125
      %2127 = vrot.lane.b32.xlu0 %v575, 4
      %v2128 = vpop.permute.xlu0 %2127
      %2129 = vrot.lane.b32.xlu0 %v578, 4
      %v2130 = vpop.permute.xlu0 %2129
      %2131 = vrot.lane.b32.xlu0 %v581, 4
      %v2132 = vpop.permute.xlu0 %2131
      %2133 = vrot.lane.b32.xlu0 %v584, 4
      %v2134 = vpop.permute.xlu0 %2133
      %2135 = vrot.lane.b32.xlu0 %v587, 4
      %v2136 = vpop.permute.xlu0 %2135
      %2137 = vrot.lane.b32.xlu0 %v590, 4
      %v2138 = vpop.permute.xlu0 %2137
      %2139 = vrot.lane.b32.xlu0 %v593, 4
      %v2140 = vpop.permute.xlu0 %2139
      %2141 = vrot.lane.b32.xlu0 %v596, 4
      %v2142 = vpop.permute.xlu0 %2141
      %2143 = vrot.lane.b32.xlu0 %v599, 4
      %v2144 = vpop.permute.xlu0 %2143
      %2145 = vrot.lane.b32.xlu0 %v602, 4
      %v2146 = vpop.permute.xlu0 %2145
      %2147 = vrot.lane.b32.xlu0 %v605, 4
      %v2148 = vpop.permute.xlu0 %2147
      %2149 = vrot.lane.b32.xlu0 %v608, 4
      %v2150 = vpop.permute.xlu0 %2149
      %2151 = vrot.lane.b32.xlu0 %v611, 4
      %v2152 = vpop.permute.xlu0 %2151
      %2153 = vrot.lane.b32.xlu0 %v614, 4
      %v2154 = vpop.permute.xlu0 %2153
      %2155 = vrot.lane.b32.xlu0 %v617, 4
      %v2156 = vpop.permute.xlu0 %2155
      %2157 = vrot.lane.b32.xlu0 %v620, 4
      %v2158 = vpop.permute.xlu0 %2157
      %2159 = vrot.lane.b32.xlu0 %v623, 4
      %v2160 = vpop.permute.xlu0 %2159
      %2161 = vrot.lane.b32.xlu0 %v626, 4
      %v2162 = vpop.permute.xlu0 %2161
      %2163 = vrot.lane.b32.xlu0 %v629, 4
      %v2164 = vpop.permute.xlu0 %2163
      %2165 = vrot.lane.b32.xlu0 %v632, 4
      %v2166 = vpop.permute.xlu0 %2165
      %2167 = vrot.lane.b32.xlu0 %v635, 4
      %v2168 = vpop.permute.xlu0 %2167
      %v2201 = vsel %vm642, %v2073, %v2106
      %v2202 = vsel %vm642, %v2074, %v2108
      %v2203 = vsel %vm642, %v2075, %v2110
      %v2204 = vsel %vm642, %v2076, %v2112
      %v2205 = vsel %vm642, %v2077, %v2114
      %v2206 = vsel %vm642, %v2078, %v2116
      %v2207 = vsel %vm642, %v2079, %v2118
      %v2208 = vsel %vm642, %v2080, %v2120
      %v2209 = vsel %vm642, %v2081, %v2122
      %v2210 = vsel %vm642, %v2082, %v2124
      %v2211 = vsel %vm642, %v2083, %v2126
      %v2212 = vsel %vm642, %v2084, %v2128
      %v2213 = vsel %vm642, %v2085, %v2130
      %v2214 = vsel %vm642, %v2086, %v2132
      %v2215 = vsel %vm642, %v2087, %v2134
      %v2216 = vsel %vm642, %v2088, %v2136
      %v2217 = vsel %vm642, %v2089, %v2138
      %v2218 = vsel %vm642, %v2090, %v2140
      %v2219 = vsel %vm642, %v2091, %v2142
      %v2220 = vsel %vm642, %v2092, %v2144
      %v2221 = vsel %vm642, %v2093, %v2146
      %v2222 = vsel %vm642, %v2094, %v2148
      %v2223 = vsel %vm642, %v2095, %v2150
      %v2224 = vsel %vm642, %v2096, %v2152
      %v2225 = vsel %vm642, %v2097, %v2154
      %v2226 = vsel %vm642, %v2098, %v2156
      %v2227 = vsel %vm642, %v2099, %v2158
      %v2228 = vsel %vm642, %v2100, %v2160
      %v2229 = vsel %vm642, %v2101, %v2162
      %v2230 = vsel %vm642, %v2102, %v2164
      %v2231 = vsel %vm642, %v2103, %v2166
      %v2232 = vsel %vm642, %v2104, %v2168
      %vm2233 = vcmask 64512
      %2234 = vst.msk [vmem:[%s354] sm:$0xff] %vm2233, %v2201
      %2235 = vst.msk [vmem:[%s354 + $0x8] sm:$0xff] %vm2233, %v2202
      %2236 = vst.msk [vmem:[%s354 + $0x10] sm:$0xff] %vm2233, %v2203
      %2237 = vst.msk [vmem:[%s354 + $0x18] sm:$0xff] %vm2233, %v2204
      %2238 = vst.msk [vmem:[%s354 + $0x20] sm:$0xff] %vm2233, %v2205
      %2239 = vst.msk [vmem:[%s354 + $0x28] sm:$0xff] %vm2233, %v2206
      %2240 = vst.msk [vmem:[%s354 + $0x30] sm:$0xff] %vm2233, %v2207
      %2241 = vst.msk [vmem:[%s354 + $0x38] sm:$0xff] %vm2233, %v2208
      %2242 = vst.msk [vmem:[%s354 + $0x40] sm:$0xff] %vm2233, %v2209
      %2243 = vst.msk [vmem:[%s354 + $0x48] sm:$0xff] %vm2233, %v2210
      %2244 = vst.msk [vmem:[%s354 + $0x50] sm:$0xff] %vm2233, %v2211
      %2245 = vst.msk [vmem:[%s354 + $0x58] sm:$0xff] %vm2233, %v2212
      %2246 = vst.msk [vmem:[%s354 + $0x60] sm:$0xff] %vm2233, %v2213
      %2247 = vst.msk [vmem:[%s354 + $0x68] sm:$0xff] %vm2233, %v2214
      %2248 = vst.msk [vmem:[%s354 + $0x70] sm:$0xff] %vm2233, %v2215
      %2249 = vst.msk [vmem:[%s354 + $0x78] sm:$0xff] %vm2233, %v2216
      %2250 = vst.msk [vmem:[%s354 + $0x80] sm:$0xff] %vm2233, %v2217
      %2251 = vst.msk [vmem:[%s354 + $0x88] sm:$0xff] %vm2233, %v2218
      %2252 = vst.msk [vmem:[%s354 + $0x90] sm:$0xff] %vm2233, %v2219
      %2253 = vst.msk [vmem:[%s354 + $0x98] sm:$0xff] %vm2233, %v2220
      %2254 = vst.msk [vmem:[%s354 + $0xa0] sm:$0xff] %vm2233, %v2221
      %2255 = vst.msk [vmem:[%s354 + $0xa8] sm:$0xff] %vm2233, %v2222
      %2256 = vst.msk [vmem:[%s354 + $0xb0] sm:$0xff] %vm2233, %v2223
      %2257 = vst.msk [vmem:[%s354 + $0xb8] sm:$0xff] %vm2233, %v2224
      %2258 = vst.msk [vmem:[%s354 + $0xc0] sm:$0xff] %vm2233, %v2225
      %2259 = vst.msk [vmem:[%s354 + $0xc8] sm:$0xff] %vm2233, %v2226
      %2260 = vst.msk [vmem:[%s354 + $0xd0] sm:$0xff] %vm2233, %v2227
      %2261 = vst.msk [vmem:[%s354 + $0xd8] sm:$0xff] %vm2233, %v2228
      %2262 = vst.msk [vmem:[%s354 + $0xe0] sm:$0xff] %vm2233, %v2229
      %2263 = vst.msk [vmem:[%s354 + $0xe8] sm:$0xff] %vm2233, %v2230
      %2264 = vst.msk [vmem:[%s354 + $0xf0] sm:$0xff] %vm2233, %v2231
      %2265 = vst.msk [vmem:[%s354 + $0xf8] sm:$0xff] %vm2233, %v2232
      %p2266 = scmp.lt.s32.totalorder %s22, 1
      %s2267 = scalar_select %p2266, %s22, 1
      %s2268 = smul.addr %s2267, 32
      %s2269 = smul.addr %s2268, 8
      %s2270 = scalar_lea.vmem %s9, %s2269
      // Predicated region
      $region57: #{tpu_custom_call.1} parent=55 // pred_check
        %p2271 = pneg %p239
      $region58: #{tpu_custom_call.1} parent=55 // pred_check_branch
        %2273 = sbr.rel (%p2271) target = $region60
      $region59: #{tpu_custom_call.1} parent=55 // pred_region
        _
      $region60: #{tpu_custom_call.1} parent=55 // pred_fallthru
        _
    $region56: #{tpu_custom_call.1} parent=5 // pred_fallthru
      _
    %p2274 = scmp.le.s32.totalorder 2, %s17
    // Predicated region
    $region61: #{tpu_custom_call.1} parent=5 // pred_check
      %p2275 = pneg %p2274
    $region62: #{tpu_custom_call.1} parent=5 // pred_check_branch
      %2277 = sbr.rel (%p2275) target = $region64
    $region63: #{tpu_custom_call.1} parent=5 // pred_region
      %s2278 = ssub.s32 %s17, 2
      // Predicated region
      $region65: #{tpu_custom_call.1} parent=63 // pred_check
        %p2279 = pneg %p245
      $region66: #{tpu_custom_call.1} parent=63 // pred_check_branch
        %2281 = sbr.rel (%p2279) target = $region68
      $region67: #{tpu_custom_call.1} parent=63 // pred_region
        %p2282 = scmp.lt.s32.totalorder %s23, 1
        %s2283 = scalar_select %p2282, %s23, 1
        %s2284 = smul.addr %s2283, 32
        %s2285 = smul.addr %s2284, 8
        %s2286 = scalar_lea.vmem %s9, %s2285
      $region68: #{tpu_custom_call.1} parent=63 // pred_fallthru
        _
    $region64: #{tpu_custom_call.1} parent=5 // pred_fallthru
      _
  $region6: #{tpu_custom_call.1} parent=0 // loop_footer
    %s21 = sadd.s32 1, %s17
  $region7: #{tpu_custom_call.1} parent=0 // loop_footer_branch
    %16 = sbr.rel target = $region3
  $region8: #{tpu_custom_call.1} parent=0 // loop_exit
    _

</llo_original>
